<compile_context>
chip_gen: v7x
topology: tpu7x:2x2x1
jax: 0.10.0
libtpu: 0.0.40
codegen_flags: <defaults>
</compile_context>

<pallas_src>
import functools
import math

import jax
import jax.numpy as jnp
from jax.experimental import pallas as pl
from jax.experimental.pallas import tpu as pltpu


def _causal_attn_kernel(x_ref, wqkv_ref, bqkv_ref, pos_ref, mask_ref,
                        wout_ref, bout_ref, o_ref, *, heads: int, scale: float):
    # x_ref: (bb, T, C)   wqkv: (C, 3C)   bqkv: (1, 3C)   pos: (1, C)
    # mask:  (T, T) additive fp32 (0 / -1e30)   wout: (C, C)   bout: (1, C)
    bb, T, C = x_ref.shape
    dh = C // heads

    # Fused QKV projection, fp32 accumulation on the MXU. x stays in native dtype.
    x2 = x_ref[...].reshape(bb * T, C)                          # leading-dim merge (free)
    qkv = jnp.dot(x2, wqkv_ref[...], preferred_element_type=jnp.float32)
    qkv = qkv + bqkv_ref[...].astype(jnp.float32)               # (bb*T, 3C)

    # q gets the positional bias; the softmax scale is folded here (cheapest place).
    q2 = (qkv[:, 0:C] + pos_ref[...].astype(jnp.float32)) * jnp.float32(scale)
    k2 = qkv[:, C:2 * C]
    v2 = qkv[:, 2 * C:3 * C]

    mask = mask_ref[...]                                        # (T, T), VMEM resident

    # Per-head attention; heads is small & static -> unrolled Python loop.
    # Contexts are concatenated (h-major/d-minor lane order matches the PyTorch
    # view(B,T,H,Dh) split) and projected with a single (rows, C) @ (C, C) matmul.
    ctx_parts = []
    for h in range(heads):
        sl = slice(h * dh, (h + 1) * dh)
        q_h = q2[:, sl].reshape(bb, T, dh)
        k_h = k2[:, sl].reshape(bb, T, dh)
        v_h = v2[:, sl].reshape(bb, T, dh)

        logits = jnp.einsum('bqd,bkd->bqk', q_h, k_h,
                            preferred_element_type=jnp.float32) + mask   # (bb, T, T)

        m = jnp.max(logits, axis=-1, keepdims=True)
        p = jnp.exp(logits - m)
        denom = jnp.sum(p, axis=-1, keepdims=True)
        attn = p * pl.reciprocal(denom, approx=True)            # EUP slot (free next to exp)

        ctx_h = jnp.einsum('bqk,bkd->bqd', attn, v_h,
                           preferred_element_type=jnp.float32)  # (bb, T, dh)
        ctx_parts.append(ctx_h.reshape(bb * T, dh))

    ctx = jnp.concatenate(ctx_parts, axis=-1)                   # (bb*T, C)
    out = jnp.dot(ctx, wout_ref[...], preferred_element_type=jnp.float32)
    out = out + bout_ref[...].astype(jnp.float32)
    # TODO(synk): nn.Dropout in to_out is omitted (inference/eval forward; identity).
    o_ref[...] = out.reshape(bb, T, C).astype(o_ref.dtype)


def _auto_block_b(B: int, T: int, C: int, itemsize: int) -> int:
    """Pick a batch block: enough rows (block_b*T) to fill the MXU M dim and amortize
    per-grid-step overhead, capped by a conservative live-VMEM budget (safe on v7x)."""
    target_rows = 512
    budget = 12 * 1024 * 1024  # live working set; well under 32 MiB scoped limit

    def live_bytes(bb):
        rows = bb * T
        io = 2 * 2 * rows * C * itemsize        # x + out blocks, double-buffered
        act = rows * (3 * C + 2 * C) * 4        # qkv + q2 + ctx in fp32
        attn = 3 * bb * T * T * 4               # logits / p / attn (per head, fp32)
        return io + act + attn

    bb = max(1, min(B, max(1, target_rows // max(1, T))))
    # Keep B divisible by block_b (avoids padded grid rows) and stay in budget.
    while bb > 1 and (B % bb != 0 or live_bytes(bb) > budget):
        bb -= 1
    return bb


@functools.partial(jax.jit, static_argnames=("heads", "block_b"))
def causal_temporal_attention(x, w_qkv, b_qkv, pos_bias, w_out, b_out, *,
                              heads: int, block_b=None):
    B, T, C = x.shape
    assert C % heads == 0
    dh = C // heads
    scale = float(dh) ** -0.5

    x_itemsize = jnp.dtype(x.dtype).itemsize
    if block_b is None:
        block_b = _auto_block_b(B, T, C, x_itemsize)

    # pos_bias (1, H, 1, Dh) -> (1, C); channel order (h-major, d-minor) matches the
    # PyTorch view(B, T, H, Dh) split, so a flat broadcast-add to q is exactly equivalent.
    pos_flat = pos_bias.reshape(1, C)

    # Additive causal mask (0 where allowed, -1e30 where masked), resident in VMEM.
    tril = jnp.tril(jnp.ones((T, T), dtype=bool))
    mask_add = jnp.where(tril, jnp.float32(0.0), jnp.float32(-1e30))

    grid = (pl.cdiv(B, block_b),)
    kernel = functools.partial(_causal_attn_kernel, heads=heads, scale=scale)

    w_itemsize = jnp.dtype(w_qkv.dtype).itemsize
    flops = int(2 * B * T * C * 3 * C        # QKV projection
                + 4 * B * T * T * C          # logits + attn@v (all heads)
                + 2 * B * T * C * C)         # output projection
    transcendentals = int(B * heads * T * T)  # exp (+ reciprocal) in softmax
    param_bytes = int((w_qkv.size + b_qkv.size + C + w_out.size + b_out.size) * w_itemsize
                      + T * T * 4)
    bytes_accessed = int(2 * B * T * C * x_itemsize + param_bytes)

    return pl.pallas_call(
        kernel,
        out_shape=jax.ShapeDtypeStruct((B, T, C), x.dtype),
        grid=grid,
        in_specs=[
            pl.BlockSpec((block_b, T, C), lambda b: (b, 0, 0)),   # x: tiled over batch
            pl.BlockSpec((C, 3 * C), lambda b: (0, 0)),           # w_qkv (resident)
            pl.BlockSpec((1, 3 * C), lambda b: (0, 0)),           # b_qkv
            pl.BlockSpec((1, C), lambda b: (0, 0)),               # pos bias (flattened)
            pl.BlockSpec((T, T), lambda b: (0, 0)),               # additive causal mask
            pl.BlockSpec((C, C), lambda b: (0, 0)),               # w_out
            pl.BlockSpec((1, C), lambda b: (0, 0)),               # b_out
        ],
        out_specs=pl.BlockSpec((block_b, T, C), lambda b: (b, 0, 0)),
        compiler_params=pltpu.CompilerParams(
            dimension_semantics=("parallel",),        # megacore sharding on v7x
            vmem_limit_bytes=32 * 1024 * 1024,        # explicit: v5e default is only 16 MiB;
                                                      # block_b budget keeps us << 64 MiB (v7x)
        ),
        cost_estimate=pl.CostEstimate(flops=flops,
                                      transcendentals=transcendentals,
                                      bytes_accessed=bytes_accessed),
    )(x, w_qkv, b_qkv, pos_flat, mask_add, w_out, b_out)


def causal_temporal_attention_ref(x, w_qkv, b_qkv, pos_bias, w_out, b_out, heads):
    """Pure-JAX mirror of the PyTorch forward (eval mode)."""
    B, T, C = x.shape
    dh = C // heads
    scale = dh ** -0.5
    qkv = x @ w_qkv + b_qkv
    q, k, v = jnp.split(qkv, 3, axis=-1)

    def to_heads(t):
        return t.reshape(B, T, heads, dh).transpose(0, 2, 1, 3)

    q = to_heads(q) + pos_bias                      # (B, H, T, Dh)
    k = to_heads(k)
    v = to_heads(v)
    attn = jnp.einsum('bhqd,bhkd->bhqk', q, k) * scale
    mask = jnp.tril(jnp.ones((T, T), dtype=bool))
    attn = jnp.where(mask[None, None], attn, -jnp.inf)
    attn = jax.nn.softmax(attn, axis=-1)
    out = jnp.einsum('bhqk,bhkd->bhqd', attn, v)
    out = out.transpose(0, 2, 1, 3).reshape(B, T, C)
    return out @ w_out + b_out


if __name__ == "__main__":
    # Small shapes consistent with the module: dim=32, heads=4 -> head_dim=8, seq=8.
    B, T, C, H = 2, 8, 32, 4
    Dh = C // H

    key = jax.random.PRNGKey(0)
    kx, kw1, kb1, kp, kw2, kb2 = jax.random.split(key, 6)

    x = jax.random.normal(kx, (B, T, C), dtype=jnp.float32)

    # Synthetic parameters in (in, out) layout (PyTorch Linear stores (out, in)).
    bound = 1.0 / math.sqrt(C)
    w_qkv = jax.random.uniform(kw1, (C, 3 * C), jnp.float32, -bound, bound)
    b_qkv = jax.random.uniform(kb1, (1, 3 * C), jnp.float32, -bound, bound)
    pos_bias = jax.random.uniform(kp, (1, H, 1, Dh), jnp.float32, -0.3, 0.3)  # xavier-ish
    w_out = jax.random.uniform(kw2, (C, C), jnp.float32, -bound, bound)
    b_out = jax.random.uniform(kb2, (1, C), jnp.float32, -bound, bound)

    out = causal_temporal_attention(x, w_qkv, b_qkv, pos_bias, w_out, b_out, heads=H)
    out = jax.block_until_ready(out)

    ref = causal_temporal_attention_ref(x, w_qkv, b_qkv, pos_bias, w_out, b_out, H)
    assert out.shape == (B, T, C)
    # Tolerance accounts for the EUP approximate reciprocal in the softmax denominator.
    assert jnp.allclose(out, ref, atol=5e-3, rtol=5e-3), "mismatch vs JAX reference"

    print("KERNEL_OK")
</pallas_src>

<mosaic_0001>
module attributes {stable_mosaic.version = 11 : i64} {
  func.func @_causal_attn_kernel(%arg0: i32, %arg1: memref<2x8x32xf32, #tpu.memory_space<vmem>>, %arg2: memref<32x96xf32, #tpu.memory_space<vmem>>, %arg3: memref<1x96xf32, #tpu.memory_space<vmem>>, %arg4: memref<1x32xf32, #tpu.memory_space<vmem>>, %arg5: memref<8x8xf32, #tpu.memory_space<vmem>>, %arg6: memref<32x32xf32, #tpu.memory_space<vmem>>, %arg7: memref<1x32xf32, #tpu.memory_space<vmem>>, %arg8: memref<2x8x32xf32, #tpu.memory_space<vmem>>) attributes {dimension_semantics = [#tpu.dimension_semantics<parallel>], iteration_bounds = array<i64: 1>, scalar_prefetch = 0 : i64, scratch_operands = 0 : i64, tpu.core_type = #tpu.core_type<tc>, window_params = [{transform_indices = @transform_0, window_bounds = array<i64: 2, 8, 32>}, {pipeline_mode = #tpu.pipeline_mode<synchronous>, transform_indices = @transform_1, window_bounds = array<i64: 32, 96>}, {pipeline_mode = #tpu.pipeline_mode<synchronous>, transform_indices = @transform_2, window_bounds = array<i64: 1, 96>}, {pipeline_mode = #tpu.pipeline_mode<synchronous>, transform_indices = @transform_3, window_bounds = array<i64: 1, 32>}, {pipeline_mode = #tpu.pipeline_mode<synchronous>, transform_indices = @transform_4, window_bounds = array<i64: 8, 8>}, {pipeline_mode = #tpu.pipeline_mode<synchronous>, transform_indices = @transform_5, window_bounds = array<i64: 32, 32>}, {pipeline_mode = #tpu.pipeline_mode<synchronous>, transform_indices = @transform_6, window_bounds = array<i64: 1, 32>}, {transform_indices = @transform_7, window_bounds = array<i64: 2, 8, 32>}]} {
    %c0 = arith.constant 0 : index
    %c0_0 = arith.constant 0 : index
    %c0_1 = arith.constant 0 : index
    %0 = vector.load %arg1[%c0, %c0_0, %c0_1] : memref<2x8x32xf32, #tpu.memory_space<vmem>>, vector<2x8x32xf32>
    %1 = vector.shape_cast %0 : vector<2x8x32xf32> to vector<16x32xf32>
    %c0_2 = arith.constant 0 : index
    %c0_3 = arith.constant 0 : index
    %2 = vector.load %arg2[%c0_2, %c0_3] : memref<32x96xf32, #tpu.memory_space<vmem>>, vector<32x96xf32>
    %cst = arith.constant dense<0.000000e+00> : vector<16x96xf32>
    %3 = tpu.matmul %1, %2, %cst {dimension_numbers = #tpu.dot_dimension_numbers<[1], [0], [0], [1], [0, 0, 1, 1], [], []>} : vector<16x32xf32>, vector<32x96xf32>, vector<16x96xf32> -> vector<16x96xf32>
    %c0_4 = arith.constant 0 : index
    %c0_5 = arith.constant 0 : index
    %4 = vector.load %arg3[%c0_4, %c0_5] : memref<1x96xf32, #tpu.memory_space<vmem>>, vector<1x96xf32>
    %5 = vector.broadcast %4 : vector<1x96xf32> to vector<16x96xf32>
    %6 = arith.addf %3, %5 : vector<16x96xf32>
    %7 = vector.extract_strided_slice %6 {offsets = [0, 0], sizes = [16, 32], strides = [1, 1]} : vector<16x96xf32> to vector<16x32xf32>
    %c0_6 = arith.constant 0 : index
    %c0_7 = arith.constant 0 : index
    %8 = vector.load %arg4[%c0_6, %c0_7] : memref<1x32xf32, #tpu.memory_space<vmem>>, vector<1x32xf32>
    %9 = vector.broadcast %8 : vector<1x32xf32> to vector<16x32xf32>
    %10 = arith.addf %7, %9 : vector<16x32xf32>
    %cst_8 = arith.constant 0.353553385 : f32
    %11 = vector.broadcast %cst_8 : f32 to vector<16x32xf32>
    %12 = arith.mulf %10, %11 : vector<16x32xf32>
    %13 = vector.extract_strided_slice %6 {offsets = [0, 32], sizes = [16, 32], strides = [1, 1]} : vector<16x96xf32> to vector<16x32xf32>
    %14 = vector.extract_strided_slice %6 {offsets = [0, 64], sizes = [16, 32], strides = [1, 1]} : vector<16x96xf32> to vector<16x32xf32>
    %c0_9 = arith.constant 0 : index
    %c0_10 = arith.constant 0 : index
    %15 = vector.load %arg5[%c0_9, %c0_10] : memref<8x8xf32, #tpu.memory_space<vmem>>, vector<8x8xf32>
    %16 = vector.extract_strided_slice %12 {offsets = [0, 0], sizes = [16, 8], strides = [1, 1]} : vector<16x32xf32> to vector<16x8xf32>
    %17 = vector.shape_cast %16 : vector<16x8xf32> to vector<2x8x8xf32>
    %18 = vector.extract_strided_slice %13 {offsets = [0, 0], sizes = [16, 8], strides = [1, 1]} : vector<16x32xf32> to vector<16x8xf32>
    %19 = vector.shape_cast %18 : vector<16x8xf32> to vector<2x8x8xf32>
    %20 = vector.extract_strided_slice %14 {offsets = [0, 0], sizes = [16, 8], strides = [1, 1]} : vector<16x32xf32> to vector<16x8xf32>
    %21 = vector.shape_cast %20 : vector<16x8xf32> to vector<2x8x8xf32>
    "tpu.trace_start"() <{level = 10 : i32, message = "bqd,bkd->bqk"}> : () -> ()
    %cst_11 = arith.constant dense<0.000000e+00> : vector<2x8x8xf32>
    %22 = tpu.matmul %17, %19, %cst_11 {dimension_numbers = #tpu.dot_dimension_numbers<[2], [2], [1], [1], [0, 0, 0, 1, 1, 1], [0], [0]>} : vector<2x8x8xf32>, vector<2x8x8xf32>, vector<2x8x8xf32> -> vector<2x8x8xf32>
    "tpu.trace_stop"() : () -> ()
    %23 = vector.shape_cast %15 : vector<8x8xf32> to vector<1x8x8xf32>
    %24 = vector.broadcast %23 : vector<1x8x8xf32> to vector<2x8x8xf32>
    %25 = arith.addf %22, %24 : vector<2x8x8xf32>
    %cst_12 = arith.constant dense<0xFF800000> : vector<2x8xf32>
    %26 = vector.multi_reduction <maximumf>, %25, %cst_12 [2] : vector<2x8x8xf32> to vector<2x8xf32>
    %27 = vector.shape_cast %26 : vector<2x8xf32> to vector<2x8x1xf32>
    %28 = vector.broadcast %27 : vector<2x8x1xf32> to vector<2x8x8xf32>
    %29 = arith.subf %25, %28 : vector<2x8x8xf32>
    %30 = math.exp %29 : vector<2x8x8xf32>
    %cst_13 = arith.constant dense<0.000000e+00> : vector<2x8xf32>
    %31 = vector.multi_reduction <add>, %30, %cst_13 [2] : vector<2x8x8xf32> to vector<2x8xf32>
    %32 = vector.shape_cast %31 : vector<2x8xf32> to vector<2x8x1xf32>
    %33 = tpu.reciprocal %32 {approx = true} : vector<2x8x1xf32> -> vector<2x8x1xf32>
    %34 = vector.broadcast %33 : vector<2x8x1xf32> to vector<2x8x8xf32>
    %35 = arith.mulf %30, %34 : vector<2x8x8xf32>
    "tpu.trace_start"() <{level = 10 : i32, message = "bqk,bkd->bqd"}> : () -> ()
    %cst_14 = arith.constant dense<0.000000e+00> : vector<2x8x8xf32>
    %36 = tpu.matmul %35, %21, %cst_14 {dimension_numbers = #tpu.dot_dimension_numbers<[2], [1], [1], [2], [0, 0, 0, 1, 1, 2], [0], [0]>} : vector<2x8x8xf32>, vector<2x8x8xf32>, vector<2x8x8xf32> -> vector<2x8x8xf32>
    "tpu.trace_stop"() : () -> ()
    %37 = vector.shape_cast %36 : vector<2x8x8xf32> to vector<16x8xf32>
    %38 = vector.extract_strided_slice %12 {offsets = [0, 8], sizes = [16, 8], strides = [1, 1]} : vector<16x32xf32> to vector<16x8xf32>
    %39 = vector.shape_cast %38 : vector<16x8xf32> to vector<2x8x8xf32>
    %40 = vector.extract_strided_slice %13 {offsets = [0, 8], sizes = [16, 8], strides = [1, 1]} : vector<16x32xf32> to vector<16x8xf32>
    %41 = vector.shape_cast %40 : vector<16x8xf32> to vector<2x8x8xf32>
    %42 = vector.extract_strided_slice %14 {offsets = [0, 8], sizes = [16, 8], strides = [1, 1]} : vector<16x32xf32> to vector<16x8xf32>
    %43 = vector.shape_cast %42 : vector<16x8xf32> to vector<2x8x8xf32>
    "tpu.trace_start"() <{level = 10 : i32, message = "bqd,bkd->bqk"}> : () -> ()
    %cst_15 = arith.constant dense<0.000000e+00> : vector<2x8x8xf32>
    %44 = tpu.matmul %39, %41, %cst_15 {dimension_numbers = #tpu.dot_dimension_numbers<[2], [2], [1], [1], [0, 0, 0, 1, 1, 1], [0], [0]>} : vector<2x8x8xf32>, vector<2x8x8xf32>, vector<2x8x8xf32> -> vector<2x8x8xf32>
    "tpu.trace_stop"() : () -> ()
    %45 = vector.shape_cast %15 : vector<8x8xf32> to vector<1x8x8xf32>
    %46 = vector.broadcast %45 : vector<1x8x8xf32> to vector<2x8x8xf32>
    %47 = arith.addf %44, %46 : vector<2x8x8xf32>
    %cst_16 = arith.constant dense<0xFF800000> : vector<2x8xf32>
    %48 = vector.multi_reduction <maximumf>, %47, %cst_16 [2] : vector<2x8x8xf32> to vector<2x8xf32>
    %49 = vector.shape_cast %48 : vector<2x8xf32> to vector<2x8x1xf32>
    %50 = vector.broadcast %49 : vector<2x8x1xf32> to vector<2x8x8xf32>
    %51 = arith.subf %47, %50 : vector<2x8x8xf32>
    %52 = math.exp %51 : vector<2x8x8xf32>
    %cst_17 = arith.constant dense<0.000000e+00> : vector<2x8xf32>
    %53 = vector.multi_reduction <add>, %52, %cst_17 [2] : vector<2x8x8xf32> to vector<2x8xf32>
    %54 = vector.shape_cast %53 : vector<2x8xf32> to vector<2x8x1xf32>
    %55 = tpu.reciprocal %54 {approx = true} : vector<2x8x1xf32> -> vector<2x8x1xf32>
    %56 = vector.broadcast %55 : vector<2x8x1xf32> to vector<2x8x8xf32>
    %57 = arith.mulf %52, %56 : vector<2x8x8xf32>
    "tpu.trace_start"() <{level = 10 : i32, message = "bqk,bkd->bqd"}> : () -> ()
    %cst_18 = arith.constant dense<0.000000e+00> : vector<2x8x8xf32>
    %58 = tpu.matmul %57, %43, %cst_18 {dimension_numbers = #tpu.dot_dimension_numbers<[2], [1], [1], [2], [0, 0, 0, 1, 1, 2], [0], [0]>} : vector<2x8x8xf32>, vector<2x8x8xf32>, vector<2x8x8xf32> -> vector<2x8x8xf32>
    "tpu.trace_stop"() : () -> ()
    %59 = vector.shape_cast %58 : vector<2x8x8xf32> to vector<16x8xf32>
    %60 = vector.extract_strided_slice %12 {offsets = [0, 16], sizes = [16, 8], strides = [1, 1]} : vector<16x32xf32> to vector<16x8xf32>
    %61 = vector.shape_cast %60 : vector<16x8xf32> to vector<2x8x8xf32>
    %62 = vector.extract_strided_slice %13 {offsets = [0, 16], sizes = [16, 8], strides = [1, 1]} : vector<16x32xf32> to vector<16x8xf32>
    %63 = vector.shape_cast %62 : vector<16x8xf32> to vector<2x8x8xf32>
    %64 = vector.extract_strided_slice %14 {offsets = [0, 16], sizes = [16, 8], strides = [1, 1]} : vector<16x32xf32> to vector<16x8xf32>
    %65 = vector.shape_cast %64 : vector<16x8xf32> to vector<2x8x8xf32>
    "tpu.trace_start"() <{level = 10 : i32, message = "bqd,bkd->bqk"}> : () -> ()
    %cst_19 = arith.constant dense<0.000000e+00> : vector<2x8x8xf32>
    %66 = tpu.matmul %61, %63, %cst_19 {dimension_numbers = #tpu.dot_dimension_numbers<[2], [2], [1], [1], [0, 0, 0, 1, 1, 1], [0], [0]>} : vector<2x8x8xf32>, vector<2x8x8xf32>, vector<2x8x8xf32> -> vector<2x8x8xf32>
    "tpu.trace_stop"() : () -> ()
    %67 = vector.shape_cast %15 : vector<8x8xf32> to vector<1x8x8xf32>
    %68 = vector.broadcast %67 : vector<1x8x8xf32> to vector<2x8x8xf32>
    %69 = arith.addf %66, %68 : vector<2x8x8xf32>
    %cst_20 = arith.constant dense<0xFF800000> : vector<2x8xf32>
    %70 = vector.multi_reduction <maximumf>, %69, %cst_20 [2] : vector<2x8x8xf32> to vector<2x8xf32>
    %71 = vector.shape_cast %70 : vector<2x8xf32> to vector<2x8x1xf32>
    %72 = vector.broadcast %71 : vector<2x8x1xf32> to vector<2x8x8xf32>
    %73 = arith.subf %69, %72 : vector<2x8x8xf32>
    %74 = math.exp %73 : vector<2x8x8xf32>
    %cst_21 = arith.constant dense<0.000000e+00> : vector<2x8xf32>
    %75 = vector.multi_reduction <add>, %74, %cst_21 [2] : vector<2x8x8xf32> to vector<2x8xf32>
    %76 = vector.shape_cast %75 : vector<2x8xf32> to vector<2x8x1xf32>
    %77 = tpu.reciprocal %76 {approx = true} : vector<2x8x1xf32> -> vector<2x8x1xf32>
    %78 = vector.broadcast %77 : vector<2x8x1xf32> to vector<2x8x8xf32>
    %79 = arith.mulf %74, %78 : vector<2x8x8xf32>
    "tpu.trace_start"() <{level = 10 : i32, message = "bqk,bkd->bqd"}> : () -> ()
    %cst_22 = arith.constant dense<0.000000e+00> : vector<2x8x8xf32>
    %80 = tpu.matmul %79, %65, %cst_22 {dimension_numbers = #tpu.dot_dimension_numbers<[2], [1], [1], [2], [0, 0, 0, 1, 1, 2], [0], [0]>} : vector<2x8x8xf32>, vector<2x8x8xf32>, vector<2x8x8xf32> -> vector<2x8x8xf32>
    "tpu.trace_stop"() : () -> ()
    %81 = vector.shape_cast %80 : vector<2x8x8xf32> to vector<16x8xf32>
    %82 = vector.extract_strided_slice %12 {offsets = [0, 24], sizes = [16, 8], strides = [1, 1]} : vector<16x32xf32> to vector<16x8xf32>
    %83 = vector.shape_cast %82 : vector<16x8xf32> to vector<2x8x8xf32>
    %84 = vector.extract_strided_slice %13 {offsets = [0, 24], sizes = [16, 8], strides = [1, 1]} : vector<16x32xf32> to vector<16x8xf32>
    %85 = vector.shape_cast %84 : vector<16x8xf32> to vector<2x8x8xf32>
    %86 = vector.extract_strided_slice %14 {offsets = [0, 24], sizes = [16, 8], strides = [1, 1]} : vector<16x32xf32> to vector<16x8xf32>
    %87 = vector.shape_cast %86 : vector<16x8xf32> to vector<2x8x8xf32>
    "tpu.trace_start"() <{level = 10 : i32, message = "bqd,bkd->bqk"}> : () -> ()
    %cst_23 = arith.constant dense<0.000000e+00> : vector<2x8x8xf32>
    %88 = tpu.matmul %83, %85, %cst_23 {dimension_numbers = #tpu.dot_dimension_numbers<[2], [2], [1], [1], [0, 0, 0, 1, 1, 1], [0], [0]>} : vector<2x8x8xf32>, vector<2x8x8xf32>, vector<2x8x8xf32> -> vector<2x8x8xf32>
    "tpu.trace_stop"() : () -> ()
    %89 = vector.shape_cast %15 : vector<8x8xf32> to vector<1x8x8xf32>
    %90 = vector.broadcast %89 : vector<1x8x8xf32> to vector<2x8x8xf32>
    %91 = arith.addf %88, %90 : vector<2x8x8xf32>
    %cst_24 = arith.constant dense<0xFF800000> : vector<2x8xf32>
    %92 = vector.multi_reduction <maximumf>, %91, %cst_24 [2] : vector<2x8x8xf32> to vector<2x8xf32>
    %93 = vector.shape_cast %92 : vector<2x8xf32> to vector<2x8x1xf32>
    %94 = vector.broadcast %93 : vector<2x8x1xf32> to vector<2x8x8xf32>
    %95 = arith.subf %91, %94 : vector<2x8x8xf32>
    %96 = math.exp %95 : vector<2x8x8xf32>
    %cst_25 = arith.constant dense<0.000000e+00> : vector<2x8xf32>
    %97 = vector.multi_reduction <add>, %96, %cst_25 [2] : vector<2x8x8xf32> to vector<2x8xf32>
    %98 = vector.shape_cast %97 : vector<2x8xf32> to vector<2x8x1xf32>
    %99 = tpu.reciprocal %98 {approx = true} : vector<2x8x1xf32> -> vector<2x8x1xf32>
    %100 = vector.broadcast %99 : vector<2x8x1xf32> to vector<2x8x8xf32>
    %101 = arith.mulf %96, %100 : vector<2x8x8xf32>
    "tpu.trace_start"() <{level = 10 : i32, message = "bqk,bkd->bqd"}> : () -> ()
    %cst_26 = arith.constant dense<0.000000e+00> : vector<2x8x8xf32>
    %102 = tpu.matmul %101, %87, %cst_26 {dimension_numbers = #tpu.dot_dimension_numbers<[2], [1], [1], [2], [0, 0, 0, 1, 1, 2], [0], [0]>} : vector<2x8x8xf32>, vector<2x8x8xf32>, vector<2x8x8xf32> -> vector<2x8x8xf32>
    "tpu.trace_stop"() : () -> ()
    %103 = vector.shape_cast %102 : vector<2x8x8xf32> to vector<16x8xf32>
    %104 = tpu.concatenate %37, %59, %81, %103 in 1 : vector<16x8xf32>, vector<16x8xf32>, vector<16x8xf32>, vector<16x8xf32> -> vector<16x32xf32>
    %c0_27 = arith.constant 0 : index
    %c0_28 = arith.constant 0 : index
    %105 = vector.load %arg6[%c0_27, %c0_28] : memref<32x32xf32, #tpu.memory_space<vmem>>, vector<32x32xf32>
    %cst_29 = arith.constant dense<0.000000e+00> : vector<16x32xf32>
    %106 = tpu.matmul %104, %105, %cst_29 {dimension_numbers = #tpu.dot_dimension_numbers<[1], [0], [0], [1], [0, 0, 1, 1], [], []>} : vector<16x32xf32>, vector<32x32xf32>, vector<16x32xf32> -> vector<16x32xf32>
    %c0_30 = arith.constant 0 : index
    %c0_31 = arith.constant 0 : index
    %107 = vector.load %arg7[%c0_30, %c0_31] : memref<1x32xf32, #tpu.memory_space<vmem>>, vector<1x32xf32>
    %108 = vector.broadcast %107 : vector<1x32xf32> to vector<16x32xf32>
    %109 = arith.addf %106, %108 : vector<16x32xf32>
    %110 = vector.shape_cast %109 : vector<16x32xf32> to vector<2x8x32xf32>
    %c0_32 = arith.constant 0 : index
    %c0_33 = arith.constant 0 : index
    %c0_34 = arith.constant 0 : index
    %111 = vector.load %arg8[%c0_32, %c0_33, %c0_34] : memref<2x8x32xf32, #tpu.memory_space<vmem>>, vector<2x8x32xf32>
    tpu.vector_store %arg8[%c0_32, %c0_33, %c0_34], %110 {strides = array<i32>} : memref<2x8x32xf32, #tpu.memory_space<vmem>>, vector<2x8x32xf32>,
    return
  }
  func.func @transform_0(%arg0: i32) -> (i32, i32, i32) {
    %c0_i32 = arith.constant 0 : i32
    %c0_i32_0 = arith.constant 0 : i32
    %c0_i32_1 = arith.constant 0 : i32
    return %arg0, %c0_i32, %c0_i32_0 : i32, i32, i32
  }
  func.func @transform_1(%arg0: i32) -> (i32, i32) {
    %c0_i32 = arith.constant 0 : i32
    %c0_i32_0 = arith.constant 0 : i32
    %c0_i32_1 = arith.constant 0 : i32
    return %c0_i32, %c0_i32_0 : i32, i32
  }
  func.func @transform_2(%arg0: i32) -> (i32, i32) {
    %c0_i32 = arith.constant 0 : i32
    %c0_i32_0 = arith.constant 0 : i32
    %c0_i32_1 = arith.constant 0 : i32
    return %c0_i32, %c0_i32_0 : i32, i32
  }
  func.func @transform_3(%arg0: i32) -> (i32, i32) {
    %c0_i32 = arith.constant 0 : i32
    %c0_i32_0 = arith.constant 0 : i32
    %c0_i32_1 = arith.constant 0 : i32
    return %c0_i32, %c0_i32_0 : i32, i32
  }
  func.func @transform_4(%arg0: i32) -> (i32, i32) {
    %c0_i32 = arith.constant 0 : i32
    %c0_i32_0 = arith.constant 0 : i32
    %c0_i32_1 = arith.constant 0 : i32
    return %c0_i32, %c0_i32_0 : i32, i32
  }
  func.func @transform_5(%arg0: i32) -> (i32, i32) {
    %c0_i32 = arith.constant 0 : i32
    %c0_i32_0 = arith.constant 0 : i32
    %c0_i32_1 = arith.constant 0 : i32
    return %c0_i32, %c0_i32_0 : i32, i32
  }
  func.func @transform_6(%arg0: i32) -> (i32, i32) {
    %c0_i32 = arith.constant 0 : i32
    %c0_i32_0 = arith.constant 0 : i32
    %c0_i32_1 = arith.constant 0 : i32
    return %c0_i32, %c0_i32_0 : i32, i32
  }
  func.func @transform_7(%arg0: i32) -> (i32, i32, i32) {
    %c0_i32 = arith.constant 0 : i32
    %c0_i32_0 = arith.constant 0 : i32
    %c0_i32_1 = arith.constant 0 : i32
    return %arg0, %c0_i32, %c0_i32_0 : i32, i32, i32
  }
}

</mosaic_0001>

<llo_original>
// kernel: causal_temporal_attention.1
$region0: #{causal_temporal_attention.1}
  #allocation0 [shape = 'u32[]', space=smem, size = 0x4, offset = 0x4, fixed_abs, tag = 'smem constant byte address 0x4 - core index']
  #allocation1 [shape = 'u32[144,128]{1,0:T(1,128)}', space=vmem, size = 0x12000, scoped, tag = 'internal scratch']
  %s0 = inlined_call_operand.hbm [shape: f32[2,8,32], index: 0, kind: input, shape index: {}]
  %s1 = inlined_call_operand.hbm [shape: f32[32,96], index: 1, kind: input, shape index: {}]
  %s2 = inlined_call_operand.vmem [shape: f32[1,96], index: 2, kind: input, shape index: {}]
  %s3 = inlined_call_operand.vmem [shape: f32[1,32], index: 3, kind: input, shape index: {}]
  %s4 = inlined_call_operand.vmem [shape: f32[8,8], index: 4, kind: input, shape index: {}]
  %s5 = inlined_call_operand.vmem [shape: f32[32,32], index: 5, kind: input, shape index: {}]
  %s6 = inlined_call_operand.vmem [shape: f32[1,32], index: 6, kind: input, shape index: {}]
  %s7 = inlined_call_operand.hbm [shape: f32[2,8,32], index: 7, kind: output, shape index: {}]
  %s8 = sld [smem:[#allocation0]]
  $region46: #{causal_temporal_attention.1} parent=0
    _
  %s10 = ssub.s32 1, %s8
  %s11 = scalar_select 0, %s10, %s8
  $region1: #{causal_temporal_attention.1} parent=0
    #allocation2 [shape = 'u8[8192]{0}', space=vmem, size = 0x2000, scoped, tag = 'input window, operand 0, single buffered']
    #allocation3 [shape = 's32[1]{0}', space=sflag, size = 0x4, scoped, tag = 'scoped memory for causal_temporal_attention.1']
    #allocation4 [shape = 's32[1]{0}', space=sflag, size = 0x4, scoped, tag = 'scoped memory for causal_temporal_attention.1']
    #allocation5 [shape = 'u8[16384]{0}', space=vmem, size = 0x4000, scoped, tag = 'input window, operand 1, single buffered']
    #allocation6 [shape = 's32[1]{0}', space=sflag, size = 0x4, scoped, tag = 'scoped memory for causal_temporal_attention.1']
    #allocation7 [shape = 'u8[8192]{0}', space=vmem, size = 0x2000, scoped, tag = 'output window, operand 0, single buffered']
    %12 = vsyncpa [#allocation3], 0
    %13 = vsyncpa [#allocation6], 0
    %14 = vsyncpa [#allocation4], 0
    // Predicated region
    $region2: #{causal_temporal_attention.1} parent=1 // pred_check
      _
    $region3: #{causal_temporal_attention.1} parent=1 // pred_check_branch
      %16 = sbr.rel (0) target = $region5
    $region4: #{causal_temporal_attention.1} parent=1 // pred_region
      %s18 = ssub.s32 256, 256
      %19 = vsyncadd [#allocation3], %s18
      %s20 = sshll.u32 [#allocation2], 4
      %s21 = int_to_ptr.vmem [resolvable:$true] %s20
      %26 = dma.hbm_to_vmem [thread:$0]  %s0, 256, %s21, [#allocation3], 128, 128, 8
    $region5: #{causal_temporal_attention.1} parent=1 // pred_fallthru
      _
    // Predicated region
    $region6: #{causal_temporal_attention.1} parent=1 // pred_check
      _
    $region7: #{causal_temporal_attention.1} parent=1 // pred_check_branch
      %28 = sbr.rel (0) target = $region9
    $region8: #{causal_temporal_attention.1} parent=1 // pred_region
      %s30 = ssub.s32 512, 512
      %31 = vsyncadd [#allocation6], %s30
      %s32 = sshll.u32 [#allocation5], 4
      %s33 = int_to_ptr.vmem [resolvable:$true] %s32
      %38 = dma.hbm_to_vmem [thread:$0]  %s1, 512, %s33, [#allocation6], 128, 128, 8
    $region9: #{causal_temporal_attention.1} parent=1 // pred_fallthru
      _
    // Predicated region
    $region10: #{causal_temporal_attention.1} parent=1 // pred_check
      _
    $region11: #{causal_temporal_attention.1} parent=1 // pred_check_branch
      %40 = sbr.rel (0) target = $region13
    $region12: #{causal_temporal_attention.1} parent=1 // pred_region
      _
    $region13: #{causal_temporal_attention.1} parent=1 // pred_fallthru
      _
    // Predicated region
    $region14: #{causal_temporal_attention.1} parent=1 // pred_check
      _
    $region15: #{causal_temporal_attention.1} parent=1 // pred_check_branch
      %42 = sbr.rel (0) target = $region17
    $region16: #{causal_temporal_attention.1} parent=1 // pred_region
      _
    $region17: #{causal_temporal_attention.1} parent=1 // pred_fallthru
      _
    // Predicated region
    $region18: #{causal_temporal_attention.1} parent=1 // pred_check
      _
    $region19: #{causal_temporal_attention.1} parent=1 // pred_check_branch
      %44 = sbr.rel (0) target = $region21
    $region20: #{causal_temporal_attention.1} parent=1 // pred_region
      _
    $region21: #{causal_temporal_attention.1} parent=1 // pred_fallthru
      _
    // Predicated region
    $region22: #{causal_temporal_attention.1} parent=1 // pred_check
      _
    $region23: #{causal_temporal_attention.1} parent=1 // pred_check_branch
      %46 = sbr.rel (0) target = $region25
    $region24: #{causal_temporal_attention.1} parent=1 // pred_region
      _
    $region25: #{causal_temporal_attention.1} parent=1 // pred_fallthru
      _
    // Predicated region
    $region26: #{causal_temporal_attention.1} parent=1 // pred_check
      _
    $region27: #{causal_temporal_attention.1} parent=1 // pred_check_branch
      %48 = sbr.rel (0) target = $region29
    $region28: #{causal_temporal_attention.1} parent=1 // pred_region
      _
    $region29: #{causal_temporal_attention.1} parent=1 // pred_fallthru
      _
    // Predicated region
    $region30: #{causal_temporal_attention.1} parent=1 // pred_check
      _
    $region31: #{causal_temporal_attention.1} parent=1 // pred_check_branch
      %50 = sbr.rel (0) target = $region33
    $region32: #{causal_temporal_attention.1} parent=1 // pred_region
      %51 = dma.done [#allocation3], 256
    $region33: #{causal_temporal_attention.1} parent=1 // pred_fallthru
      _
    // Predicated region
    $region34: #{causal_temporal_attention.1} parent=1 // pred_check
      _
    $region35: #{causal_temporal_attention.1} parent=1 // pred_check_branch
      %53 = sbr.rel (0) target = $region37
    $region36: #{causal_temporal_attention.1} parent=1 // pred_region
      %54 = dma.done [#allocation6], 512
    $region37: #{causal_temporal_attention.1} parent=1 // pred_fallthru
      _
    %v55 = vld [vmem:[#allocation2] sm:$0xff]
    %v56 = vld [vmem:[#allocation2 + $0x8] sm:$0xff]
    %v57 = vld [vmem:[#allocation5] sm:$0xff]
    %v58 = vld [vmem:[#allocation5 + $0x8] sm:$0xff]
    %v59 = vld [vmem:[#allocation5 + $0x10] sm:$0xff]
    %v60 = vld [vmem:[#allocation5 + $0x18] sm:$0xff]
    %v61 = vld [vmem:[%s2] sm:$0x1]
    %v63 = vlaneseq
    %v64 = vshrl.u32 %v63, 7
    %v65 = vsub.s32 0, %v64
    %v66 = vrot.slane %v61, %v65
    %vm68 = vcmask 261120
    %v70 = vsel %vm68, %v55, 0
    %v73 = vsel %vm68, %v56, 0
    %75 = vmatprep.subr.mxu0 0.0
    %76 = vmatpush1.msra.mxu0 %v57
    %77 = vmatprep.subr.mxu0 0.0
    %78 = vmatpush1.msra.mxu0 %v58
    %79 = vmatprep.subr.mxu0 0.0
    %80 = vmatpush1.msra.mxu0 %v59
    %81 = vmatprep.subr.mxu0 0.0
    %82 = vmatpush1.msra.mxu0 %v60
    %83 = vmatprep.subr.mxu0 0.0
    %84 = vmatpush1.msra.mxu0 0.0
    %85 = vmatprep.subr.mxu0 0.0
    %86 = vmatpush1.msra.mxu0 0.0
    %87 = vmatprep.subr.mxu0 0.0
    %88 = vmatpush1.msra.mxu0 0.0
    %89 = vmatprep.subr.mxu0 0.0
    %90 = vmatpush1.msra.mxu0 0.0
    %91 = vmatprep.subr.mxu0 0.0
    %92 = vmatpush1.msra.mxu0 0.0
    %93 = vmatprep.subr.mxu0 0.0
    %94 = vmatpush1.msra.mxu0 0.0
    %95 = vmatprep.subr.mxu0 0.0
    %96 = vmatpush1.msra.mxu0 0.0
    %97 = vmatprep.subr.mxu0 0.0
    %98 = vmatpush1.msra.mxu0 0.0
    %99 = vmatprep.subr.mxu0 0.0
    %100 = vmatpush1.msra.mxu0 0.0
    %101 = vmatprep.subr.mxu0 0.0
    %102 = vmatpush1.msra.mxu0 0.0
    %103 = vmatprep.subr.mxu0 0.0
    %104 = vmatpush1.msra.mxu0 0.0
    %105 = vmatprep.subr.mxu0 0.0
    %106 = vmatpush1.msra.mxu0 0.0
    %107 = vmatprep.subr.mxu0 0.0
    %108 = vmatpush1.msra.mxu0 0.0
    %109 = vmatprep.subr.mxu0 0.0
    %110 = vmatpush1.msra.mxu0 0.0
    %111 = vmatprep.subr.mxu0 0.0
    %112 = vmatpush1.msra.mxu0 0.0
    %113 = vmatprep.subr.mxu0 0.0
    %114 = vmatpush1.msra.mxu0 0.0
    %115 = vmatprep.subr.mxu0 0.0
    %116 = vmatpush1.msra.mxu0 0.0
    %117 = vmatprep.subr.mxu0 0.0
    %118 = vmatpush1.msra.mxu0 0.0
    %119 = vmatprep.subr.mxu0 0.0
    %120 = vmatpush1.msra.mxu0 0.0
    %121 = vmatprep.subr.mxu0 0.0
    %122 = vmatpush1.msra.mxu0 0.0
    %123 = vmatprep.subr.mxu0 0.0
    %124 = vmatpush1.msra.mxu0 0.0
    %125 = vmatprep.subr.mxu0 0.0
    %126 = vmatpush1.msra.mxu0 0.0
    %127 = vmatprep.subr.mxu0 0.0
    %128 = vmatpush1.msra.mxu0 0.0
    %129 = vmatprep.subr.mxu0 0.0
    %130 = vmatpush1.msra.mxu0 0.0
    %131 = vmatprep.subr.mxu0 0.0
    %132 = vmatpush1.msra.mxu0 0.0
    %133 = vmatprep.subr.mxu0 0.0
    %134 = vmatpush1.msra.mxu0 0.0
    %135 = vmatprep.subr.mxu0 0.0
    %136 = vmatpush1.msra.mxu0 0.0
    %137 = vmatprep.subr.mxu0 0.0
    %138 = vmatpush1.msra.mxu0 0.0
    %139 = vmatprep.mubr.f32.mxu0 0.0
    %140 = vmatmul.mubr.f32.gmra.mrb[0].mxu0 %v70
    %v141 = vpop.f32.mrb[0].mxu0
    %v142 = vadd.f32 %v66, %v141
    %v143 = vpop.f32.mrb[0].mxu0
    %144 = vmatprep.mubr.f32.mxu0 0.0
    %145 = vmatmul.mubr.f32.gmra.mrb[0].mxu0 %v73
    %v146 = vpop.f32.mrb[0].mxu0
    %v147 = vadd.f32 %v66, %v146
    %v148 = vpop.f32.mrb[0].mxu0
    %149 = vdwg.mxu0
    %v150 = vld [vmem:[%s3] sm:$0x1]
    %v152 = vlaneseq
    %v153 = vshrl.u32 %v152, 7
    %v154 = vsub.s32 0, %v153
    %v155 = vrot.slane %v150, %v154
    %v157 = vadd.f32 %v142, %v155
    %v158 = vadd.f32 %v147, %v155
    %v159 = vmul.f32 %v157, 0.35355338
    %v160 = vmul.f32 %v158, 0.35355338
    %v161 = vld [vmem:[%s4] sm:$0xff]
    %163 = vrot.lane.b32.xlu0 %v142, 96
    %v164 = vpop.permute.xlu0 %163
    %vm165 = vcmask 64512
    %v167 = vsel %vm165, %v159, 0
    %v169 = vsel %vm165, %v164, 0
    %171 = vmatprep.subr.mxu0 0.0
    %172 = vmatpush1.xpose.msra.mxu0 %v169
    %173 = vmatprep.subr.mxu0 0.0
    %174 = vmatpush1.xpose.msra.mxu0 0.0
    %175 = vmatprep.subr.mxu0 0.0
    %176 = vmatpush1.xpose.msra.mxu0 0.0
    %177 = vmatprep.subr.mxu0 0.0
    %178 = vmatpush1.xpose.msra.mxu0 0.0
    %179 = vmatprep.subr.mxu0 0.0
    %180 = vmatpush1.xpose.msra.mxu0 0.0
    %181 = vmatprep.subr.mxu0 0.0
    %182 = vmatpush1.xpose.msra.mxu0 0.0
    %183 = vmatprep.subr.mxu0 0.0
    %184 = vmatpush1.xpose.msra.mxu0 0.0
    %185 = vmatprep.subr.mxu0 0.0
    %186 = vmatpush1.xpose.msra.mxu0 0.0
    %187 = vmatprep.subr.mxu0 0.0
    %188 = vmatpush1.xpose.msra.mxu0 0.0
    %189 = vmatprep.subr.mxu0 0.0
    %190 = vmatpush1.xpose.msra.mxu0 0.0
    %191 = vmatprep.subr.mxu0 0.0
    %192 = vmatpush1.xpose.msra.mxu0 0.0
    %193 = vmatprep.subr.mxu0 0.0
    %194 = vmatpush1.xpose.msra.mxu0 0.0
    %195 = vmatprep.subr.mxu0 0.0
    %196 = vmatpush1.xpose.msra.mxu0 0.0
    %197 = vmatprep.subr.mxu0 0.0
    %198 = vmatpush1.xpose.msra.mxu0 0.0
    %199 = vmatprep.subr.mxu0 0.0
    %200 = vmatpush1.xpose.msra.mxu0 0.0
    %201 = vmatprep.subr.mxu0 0.0
    %202 = vmatpush1.xpose.msra.mxu0 0.0
    %203 = vmatprep.subr.mxu0 0.0
    %204 = vmatpush1.xpose.msra.mxu0 0.0
    %205 = vmatprep.subr.mxu0 0.0
    %206 = vmatpush1.xpose.msra.mxu0 0.0
    %207 = vmatprep.subr.mxu0 0.0
    %208 = vmatpush1.xpose.msra.mxu0 0.0
    %209 = vmatprep.subr.mxu0 0.0
    %210 = vmatpush1.xpose.msra.mxu0 0.0
    %211 = vmatprep.subr.mxu0 0.0
    %212 = vmatpush1.xpose.msra.mxu0 0.0
    %213 = vmatprep.subr.mxu0 0.0
    %214 = vmatpush1.xpose.msra.mxu0 0.0
    %215 = vmatprep.subr.mxu0 0.0
    %216 = vmatpush1.xpose.msra.mxu0 0.0
    %217 = vmatprep.subr.mxu0 0.0
    %218 = vmatpush1.xpose.msra.mxu0 0.0
    %219 = vmatprep.subr.mxu0 0.0
    %220 = vmatpush1.xpose.msra.mxu0 0.0
    %221 = vmatprep.subr.mxu0 0.0
    %222 = vmatpush1.xpose.msra.mxu0 0.0
    %223 = vmatprep.subr.mxu0 0.0
    %224 = vmatpush1.xpose.msra.mxu0 0.0
    %225 = vmatprep.subr.mxu0 0.0
    %226 = vmatpush1.xpose.msra.mxu0 0.0
    %227 = vmatprep.subr.mxu0 0.0
    %228 = vmatpush1.xpose.msra.mxu0 0.0
    %229 = vmatprep.subr.mxu0 0.0
    %230 = vmatpush1.xpose.msra.mxu0 0.0
    %231 = vmatprep.subr.mxu0 0.0
    %232 = vmatpush1.xpose.msra.mxu0 0.0
    %233 = vmatprep.subr.mxu0 0.0
    %234 = vmatpush1.xpose.msra.mxu0 0.0
    %235 = vmatprep.mubr.f32.mxu0 0.0
    %236 = vmatmul.mubr.f32.gmra.mrb[0].mxu0 %v167
    %v237 = vpop.f32.mrb[0].mxu0
    %v238 = vadd.f32 %v161, %v237
    %v239 = vpop.f32.mrb[0].mxu0
    %240 = vdwg.mxu0
    %242 = vrot.lane.b32.xlu0 %v147, 96
    %v243 = vpop.permute.xlu0 %242
    %v245 = vsel %vm165, %v160, 0
    %v247 = vsel %vm165, %v243, 0
    %249 = vmatprep.subr.mxu0 0.0
    %250 = vmatpush1.xpose.msra.mxu0 %v247
    %251 = vmatprep.subr.mxu0 0.0
    %252 = vmatpush1.xpose.msra.mxu0 0.0
    %253 = vmatprep.subr.mxu0 0.0
    %254 = vmatpush1.xpose.msra.mxu0 0.0
    %255 = vmatprep.subr.mxu0 0.0
    %256 = vmatpush1.xpose.msra.mxu0 0.0
    %257 = vmatprep.subr.mxu0 0.0
    %258 = vmatpush1.xpose.msra.mxu0 0.0
    %259 = vmatprep.subr.mxu0 0.0
    %260 = vmatpush1.xpose.msra.mxu0 0.0
    %261 = vmatprep.subr.mxu0 0.0
    %262 = vmatpush1.xpose.msra.mxu0 0.0
    %263 = vmatprep.subr.mxu0 0.0
    %264 = vmatpush1.xpose.msra.mxu0 0.0
    %265 = vmatprep.subr.mxu0 0.0
    %266 = vmatpush1.xpose.msra.mxu0 0.0
    %267 = vmatprep.subr.mxu0 0.0
    %268 = vmatpush1.xpose.msra.mxu0 0.0
    %269 = vmatprep.subr.mxu0 0.0
    %270 = vmatpush1.xpose.msra.mxu0 0.0
    %271 = vmatprep.subr.mxu0 0.0
    %272 = vmatpush1.xpose.msra.mxu0 0.0
    %273 = vmatprep.subr.mxu0 0.0
    %274 = vmatpush1.xpose.msra.mxu0 0.0
    %275 = vmatprep.subr.mxu0 0.0
    %276 = vmatpush1.xpose.msra.mxu0 0.0
    %277 = vmatprep.subr.mxu0 0.0
    %278 = vmatpush1.xpose.msra.mxu0 0.0
    %279 = vmatprep.subr.mxu0 0.0
    %280 = vmatpush1.xpose.msra.mxu0 0.0
    %281 = vmatprep.subr.mxu0 0.0
    %282 = vmatpush1.xpose.msra.mxu0 0.0
    %283 = vmatprep.subr.mxu0 0.0
    %284 = vmatpush1.xpose.msra.mxu0 0.0
    %285 = vmatprep.subr.mxu0 0.0
    %286 = vmatpush1.xpose.msra.mxu0 0.0
    %287 = vmatprep.subr.mxu0 0.0
    %288 = vmatpush1.xpose.msra.mxu0 0.0
    %289 = vmatprep.subr.mxu0 0.0
    %290 = vmatpush1.xpose.msra.mxu0 0.0
    %291 = vmatprep.subr.mxu0 0.0
    %292 = vmatpush1.xpose.msra.mxu0 0.0
    %293 = vmatprep.subr.mxu0 0.0
    %294 = vmatpush1.xpose.msra.mxu0 0.0
    %295 = vmatprep.subr.mxu0 0.0
    %296 = vmatpush1.xpose.msra.mxu0 0.0
    %297 = vmatprep.subr.mxu0 0.0
    %298 = vmatpush1.xpose.msra.mxu0 0.0
    %299 = vmatprep.subr.mxu0 0.0
    %300 = vmatpush1.xpose.msra.mxu0 0.0
    %301 = vmatprep.subr.mxu0 0.0
    %302 = vmatpush1.xpose.msra.mxu0 0.0
    %303 = vmatprep.subr.mxu0 0.0
    %304 = vmatpush1.xpose.msra.mxu0 0.0
    %305 = vmatprep.subr.mxu0 0.0
    %306 = vmatpush1.xpose.msra.mxu0 0.0
    %307 = vmatprep.subr.mxu0 0.0
    %308 = vmatpush1.xpose.msra.mxu0 0.0
    %309 = vmatprep.subr.mxu0 0.0
    %310 = vmatpush1.xpose.msra.mxu0 0.0
    %311 = vmatprep.subr.mxu0 0.0
    %312 = vmatpush1.xpose.msra.mxu0 0.0
    %313 = vmatprep.mubr.f32.mxu0 0.0
    %314 = vmatmul.mubr.f32.gmra.mrb[0].mxu0 %v245
    %v315 = vpop.f32.mrb[0].mxu0
    %v316 = vadd.f32 %v161, %v315
    %v317 = vpop.f32.mrb[0].mxu0
    %318 = vdwg.mxu0
    %v319 = vsel %vm165, %v238, -inf
    %320 = vmax.xlane.f32.xlu0 %v319
    %v321 = vpop.xlane.xlu0 %320
    %v322 = vsel %vm165, %v316, -inf
    %323 = vmax.xlane.f32.xlu0 %v322
    %v324 = vpop.xlane.xlu0 %323
    %v325 = vsub.f32 %v238, %v321
    %v326 = vsub.f32 %v316, %v324
    %v327 = vmul.f32 %v325, 1.442695
    %v328 = vpow.pop %v327
    %v329 = vmul.f32 %v326, 1.442695
    %v330 = vpow.pop %v329
    %v331 = vsel %vm165, %v328, 0.0
    %332 = vadd.xlane.f32.xlu0 %v331
    %v333 = vpop.xlane.xlu0 %332
    %v334 = vsel %vm165, %v330, 0.0
    %335 = vadd.xlane.f32.xlu0 %v334
    %v336 = vpop.xlane.xlu0 %335
    %v337 = vrcp.pop %v333
    %v338 = vrcp.pop %v336
    %v339 = vmul.f32 %v328, %v337
    %v340 = vmul.f32 %v330, %v338
    %341 = vrot.lane.b32.xlu0 %v142, 64
    %v342 = vpop.permute.xlu0 %341
    %v345 = vsel %vm165, %v339, 0
    %347 = vmatprep.subr.mxu0 0.0
    %348 = vmatpush1.msra.mxu0 %v342
    %349 = vmatprep.subr.mxu0 0.0
    %350 = vmatpush1.msra.mxu0 0.0
    %351 = vmatprep.subr.mxu0 0.0
    %352 = vmatpush1.msra.mxu0 0.0
    %353 = vmatprep.subr.mxu0 0.0
    %354 = vmatpush1.msra.mxu0 0.0
    %355 = vmatprep.subr.mxu0 0.0
    %356 = vmatpush1.msra.mxu0 0.0
    %357 = vmatprep.subr.mxu0 0.0
    %358 = vmatpush1.msra.mxu0 0.0
    %359 = vmatprep.subr.mxu0 0.0
    %360 = vmatpush1.msra.mxu0 0.0
    %361 = vmatprep.subr.mxu0 0.0
    %362 = vmatpush1.msra.mxu0 0.0
    %363 = vmatprep.subr.mxu0 0.0
    %364 = vmatpush1.msra.mxu0 0.0
    %365 = vmatprep.subr.mxu0 0.0
    %366 = vmatpush1.msra.mxu0 0.0
    %367 = vmatprep.subr.mxu0 0.0
    %368 = vmatpush1.msra.mxu0 0.0
    %369 = vmatprep.subr.mxu0 0.0
    %370 = vmatpush1.msra.mxu0 0.0
    %371 = vmatprep.subr.mxu0 0.0
    %372 = vmatpush1.msra.mxu0 0.0
    %373 = vmatprep.subr.mxu0 0.0
    %374 = vmatpush1.msra.mxu0 0.0
    %375 = vmatprep.subr.mxu0 0.0
    %376 = vmatpush1.msra.mxu0 0.0
    %377 = vmatprep.subr.mxu0 0.0
    %378 = vmatpush1.msra.mxu0 0.0
    %379 = vmatprep.subr.mxu0 0.0
    %380 = vmatpush1.msra.mxu0 0.0
    %381 = vmatprep.subr.mxu0 0.0
    %382 = vmatpush1.msra.mxu0 0.0
    %383 = vmatprep.subr.mxu0 0.0
    %384 = vmatpush1.msra.mxu0 0.0
    %385 = vmatprep.subr.mxu0 0.0
    %386 = vmatpush1.msra.mxu0 0.0
    %387 = vmatprep.subr.mxu0 0.0
    %388 = vmatpush1.msra.mxu0 0.0
    %389 = vmatprep.subr.mxu0 0.0
    %390 = vmatpush1.msra.mxu0 0.0
    %391 = vmatprep.subr.mxu0 0.0
    %392 = vmatpush1.msra.mxu0 0.0
    %393 = vmatprep.subr.mxu0 0.0
    %394 = vmatpush1.msra.mxu0 0.0
    %395 = vmatprep.subr.mxu0 0.0
    %396 = vmatpush1.msra.mxu0 0.0
    %397 = vmatprep.subr.mxu0 0.0
    %398 = vmatpush1.msra.mxu0 0.0
    %399 = vmatprep.subr.mxu0 0.0
    %400 = vmatpush1.msra.mxu0 0.0
    %401 = vmatprep.subr.mxu0 0.0
    %402 = vmatpush1.msra.mxu0 0.0
    %403 = vmatprep.subr.mxu0 0.0
    %404 = vmatpush1.msra.mxu0 0.0
    %405 = vmatprep.subr.mxu0 0.0
    %406 = vmatpush1.msra.mxu0 0.0
    %407 = vmatprep.subr.mxu0 0.0
    %408 = vmatpush1.msra.mxu0 0.0
    %409 = vmatprep.subr.mxu0 0.0
    %410 = vmatpush1.msra.mxu0 0.0
    %411 = vmatprep.mubr.f32.mxu0 0.0
    %412 = vmatmul.mubr.f32.gmra.mrb[0].mxu0 %v345
    %v413 = vpop.f32.mrb[0].mxu0
    %v414 = vadd.f32 0.0, %v413
    %v415 = vpop.f32.mrb[0].mxu0
    %416 = vdwg.mxu0
    %417 = vrot.lane.b32.xlu0 %v147, 64
    %v418 = vpop.permute.xlu0 %417
    %v421 = vsel %vm165, %v340, 0
    %423 = vmatprep.subr.mxu0 0.0
    %424 = vmatpush1.msra.mxu0 %v418
    %425 = vmatprep.subr.mxu0 0.0
    %426 = vmatpush1.msra.mxu0 0.0
    %427 = vmatprep.subr.mxu0 0.0
    %428 = vmatpush1.msra.mxu0 0.0
    %429 = vmatprep.subr.mxu0 0.0
    %430 = vmatpush1.msra.mxu0 0.0
    %431 = vmatprep.subr.mxu0 0.0
    %432 = vmatpush1.msra.mxu0 0.0
    %433 = vmatprep.subr.mxu0 0.0
    %434 = vmatpush1.msra.mxu0 0.0
    %435 = vmatprep.subr.mxu0 0.0
    %436 = vmatpush1.msra.mxu0 0.0
    %437 = vmatprep.subr.mxu0 0.0
    %438 = vmatpush1.msra.mxu0 0.0
    %439 = vmatprep.subr.mxu0 0.0
    %440 = vmatpush1.msra.mxu0 0.0
    %441 = vmatprep.subr.mxu0 0.0
    %442 = vmatpush1.msra.mxu0 0.0
    %443 = vmatprep.subr.mxu0 0.0
    %444 = vmatpush1.msra.mxu0 0.0
    %445 = vmatprep.subr.mxu0 0.0
    %446 = vmatpush1.msra.mxu0 0.0
    %447 = vmatprep.subr.mxu0 0.0
    %448 = vmatpush1.msra.mxu0 0.0
    %449 = vmatprep.subr.mxu0 0.0
    %450 = vmatpush1.msra.mxu0 0.0
    %451 = vmatprep.subr.mxu0 0.0
    %452 = vmatpush1.msra.mxu0 0.0
    %453 = vmatprep.subr.mxu0 0.0
    %454 = vmatpush1.msra.mxu0 0.0
    %455 = vmatprep.subr.mxu0 0.0
    %456 = vmatpush1.msra.mxu0 0.0
    %457 = vmatprep.subr.mxu0 0.0
    %458 = vmatpush1.msra.mxu0 0.0
    %459 = vmatprep.subr.mxu0 0.0
    %460 = vmatpush1.msra.mxu0 0.0
    %461 = vmatprep.subr.mxu0 0.0
    %462 = vmatpush1.msra.mxu0 0.0
    %463 = vmatprep.subr.mxu0 0.0
    %464 = vmatpush1.msra.mxu0 0.0
    %465 = vmatprep.subr.mxu0 0.0
    %466 = vmatpush1.msra.mxu0 0.0
    %467 = vmatprep.subr.mxu0 0.0
    %468 = vmatpush1.msra.mxu0 0.0
    %469 = vmatprep.subr.mxu0 0.0
    %470 = vmatpush1.msra.mxu0 0.0
    %471 = vmatprep.subr.mxu0 0.0
    %472 = vmatpush1.msra.mxu0 0.0
    %473 = vmatprep.subr.mxu0 0.0
    %474 = vmatpush1.msra.mxu0 0.0
    %475 = vmatprep.subr.mxu0 0.0
    %476 = vmatpush1.msra.mxu0 0.0
    %477 = vmatprep.subr.mxu0 0.0
    %478 = vmatpush1.msra.mxu0 0.0
    %479 = vmatprep.subr.mxu0 0.0
    %480 = vmatpush1.msra.mxu0 0.0
    %481 = vmatprep.subr.mxu0 0.0
    %482 = vmatpush1.msra.mxu0 0.0
    %483 = vmatprep.subr.mxu0 0.0
    %484 = vmatpush1.msra.mxu0 0.0
    %485 = vmatprep.subr.mxu0 0.0
    %486 = vmatpush1.msra.mxu0 0.0
    %487 = vmatprep.mubr.f32.mxu0 0.0
    %488 = vmatmul.mubr.f32.gmra.mrb[0].mxu0 %v421
    %v489 = vpop.f32.mrb[0].mxu0
    %v490 = vadd.f32 0.0, %v489
    %v491 = vpop.f32.mrb[0].mxu0
    %492 = vdwg.mxu0
    %493 = vrot.lane.b32.xlu0 %v159, 120
    %v494 = vpop.permute.xlu0 %493
    %495 = vrot.lane.b32.xlu0 %v142, 88
    %v496 = vpop.permute.xlu0 %495
    %v497 = vsel %vm165, %v494, 0
    %v499 = vsel %vm165, %v496, 0
    %501 = vmatprep.subr.mxu0 0.0
    %502 = vmatpush1.xpose.msra.mxu0 %v499
    %503 = vmatprep.subr.mxu0 0.0
    %504 = vmatpush1.xpose.msra.mxu0 0.0
    %505 = vmatprep.subr.mxu0 0.0
    %506 = vmatpush1.xpose.msra.mxu0 0.0
    %507 = vmatprep.subr.mxu0 0.0
    %508 = vmatpush1.xpose.msra.mxu0 0.0
    %509 = vmatprep.subr.mxu0 0.0
    %510 = vmatpush1.xpose.msra.mxu0 0.0
    %511 = vmatprep.subr.mxu0 0.0
    %512 = vmatpush1.xpose.msra.mxu0 0.0
    %513 = vmatprep.subr.mxu0 0.0
    %514 = vmatpush1.xpose.msra.mxu0 0.0
    %515 = vmatprep.subr.mxu0 0.0
    %516 = vmatpush1.xpose.msra.mxu0 0.0
    %517 = vmatprep.subr.mxu0 0.0
    %518 = vmatpush1.xpose.msra.mxu0 0.0
    %519 = vmatprep.subr.mxu0 0.0
    %520 = vmatpush1.xpose.msra.mxu0 0.0
    %521 = vmatprep.subr.mxu0 0.0
    %522 = vmatpush1.xpose.msra.mxu0 0.0
    %523 = vmatprep.subr.mxu0 0.0
    %524 = vmatpush1.xpose.msra.mxu0 0.0
    %525 = vmatprep.subr.mxu0 0.0
    %526 = vmatpush1.xpose.msra.mxu0 0.0
    %527 = vmatprep.subr.mxu0 0.0
    %528 = vmatpush1.xpose.msra.mxu0 0.0
    %529 = vmatprep.subr.mxu0 0.0
    %530 = vmatpush1.xpose.msra.mxu0 0.0
    %531 = vmatprep.subr.mxu0 0.0
    %532 = vmatpush1.xpose.msra.mxu0 0.0
    %533 = vmatprep.subr.mxu0 0.0
    %534 = vmatpush1.xpose.msra.mxu0 0.0
    %535 = vmatprep.subr.mxu0 0.0
    %536 = vmatpush1.xpose.msra.mxu0 0.0
    %537 = vmatprep.subr.mxu0 0.0
    %538 = vmatpush1.xpose.msra.mxu0 0.0
    %539 = vmatprep.subr.mxu0 0.0
    %540 = vmatpush1.xpose.msra.mxu0 0.0
    %541 = vmatprep.subr.mxu0 0.0
    %542 = vmatpush1.xpose.msra.mxu0 0.0
    %543 = vmatprep.subr.mxu0 0.0
    %544 = vmatpush1.xpose.msra.mxu0 0.0
    %545 = vmatprep.subr.mxu0 0.0
    %546 = vmatpush1.xpose.msra.mxu0 0.0
    %547 = vmatprep.subr.mxu0 0.0
    %548 = vmatpush1.xpose.msra.mxu0 0.0
    %549 = vmatprep.subr.mxu0 0.0
    %550 = vmatpush1.xpose.msra.mxu0 0.0
    %551 = vmatprep.subr.mxu0 0.0
    %552 = vmatpush1.xpose.msra.mxu0 0.0
    %553 = vmatprep.subr.mxu0 0.0
    %554 = vmatpush1.xpose.msra.mxu0 0.0
    %555 = vmatprep.subr.mxu0 0.0
    %556 = vmatpush1.xpose.msra.mxu0 0.0
    %557 = vmatprep.subr.mxu0 0.0
    %558 = vmatpush1.xpose.msra.mxu0 0.0
    %559 = vmatprep.subr.mxu0 0.0
    %560 = vmatpush1.xpose.msra.mxu0 0.0
    %561 = vmatprep.subr.mxu0 0.0
    %562 = vmatpush1.xpose.msra.mxu0 0.0
    %563 = vmatprep.subr.mxu0 0.0
    %564 = vmatpush1.xpose.msra.mxu0 0.0
    %565 = vmatprep.mubr.f32.mxu0 0.0
    %566 = vmatmul.mubr.f32.gmra.mrb[0].mxu0 %v497
    %v567 = vpop.f32.mrb[0].mxu0
    %v568 = vadd.f32 %v161, %v567
    %v569 = vpop.f32.mrb[0].mxu0
    %570 = vdwg.mxu0
    %571 = vrot.lane.b32.xlu0 %v160, 120
    %v572 = vpop.permute.xlu0 %571
    %573 = vrot.lane.b32.xlu0 %v147, 88
    %v574 = vpop.permute.xlu0 %573
    %v575 = vsel %vm165, %v572, 0
    %v577 = vsel %vm165, %v574, 0
    %579 = vmatprep.subr.mxu0 0.0
    %580 = vmatpush1.xpose.msra.mxu0 %v577
    %581 = vmatprep.subr.mxu0 0.0
    %582 = vmatpush1.xpose.msra.mxu0 0.0
    %583 = vmatprep.subr.mxu0 0.0
    %584 = vmatpush1.xpose.msra.mxu0 0.0
    %585 = vmatprep.subr.mxu0 0.0
    %586 = vmatpush1.xpose.msra.mxu0 0.0
    %587 = vmatprep.subr.mxu0 0.0
    %588 = vmatpush1.xpose.msra.mxu0 0.0
    %589 = vmatprep.subr.mxu0 0.0
    %590 = vmatpush1.xpose.msra.mxu0 0.0
    %591 = vmatprep.subr.mxu0 0.0
    %592 = vmatpush1.xpose.msra.mxu0 0.0
    %593 = vmatprep.subr.mxu0 0.0
    %594 = vmatpush1.xpose.msra.mxu0 0.0
    %595 = vmatprep.subr.mxu0 0.0
    %596 = vmatpush1.xpose.msra.mxu0 0.0
    %597 = vmatprep.subr.mxu0 0.0
    %598 = vmatpush1.xpose.msra.mxu0 0.0
    %599 = vmatprep.subr.mxu0 0.0
    %600 = vmatpush1.xpose.msra.mxu0 0.0
    %601 = vmatprep.subr.mxu0 0.0
    %602 = vmatpush1.xpose.msra.mxu0 0.0
    %603 = vmatprep.subr.mxu0 0.0
    %604 = vmatpush1.xpose.msra.mxu0 0.0
    %605 = vmatprep.subr.mxu0 0.0
    %606 = vmatpush1.xpose.msra.mxu0 0.0
    %607 = vmatprep.subr.mxu0 0.0
    %608 = vmatpush1.xpose.msra.mxu0 0.0
    %609 = vmatprep.subr.mxu0 0.0
    %610 = vmatpush1.xpose.msra.mxu0 0.0
    %611 = vmatprep.subr.mxu0 0.0
    %612 = vmatpush1.xpose.msra.mxu0 0.0
    %613 = vmatprep.subr.mxu0 0.0
    %614 = vmatpush1.xpose.msra.mxu0 0.0
    %615 = vmatprep.subr.mxu0 0.0
    %616 = vmatpush1.xpose.msra.mxu0 0.0
    %617 = vmatprep.subr.mxu0 0.0
    %618 = vmatpush1.xpose.msra.mxu0 0.0
    %619 = vmatprep.subr.mxu0 0.0
    %620 = vmatpush1.xpose.msra.mxu0 0.0
    %621 = vmatprep.subr.mxu0 0.0
    %622 = vmatpush1.xpose.msra.mxu0 0.0
    %623 = vmatprep.subr.mxu0 0.0
    %624 = vmatpush1.xpose.msra.mxu0 0.0
    %625 = vmatprep.subr.mxu0 0.0
    %626 = vmatpush1.xpose.msra.mxu0 0.0
    %627 = vmatprep.subr.mxu0 0.0
    %628 = vmatpush1.xpose.msra.mxu0 0.0
    %629 = vmatprep.subr.mxu0 0.0
    %630 = vmatpush1.xpose.msra.mxu0 0.0
    %631 = vmatprep.subr.mxu0 0.0
    %632 = vmatpush1.xpose.msra.mxu0 0.0
    %633 = vmatprep.subr.mxu0 0.0
    %634 = vmatpush1.xpose.msra.mxu0 0.0
    %635 = vmatprep.subr.mxu0 0.0
    %636 = vmatpush1.xpose.msra.mxu0 0.0
    %637 = vmatprep.subr.mxu0 0.0
    %638 = vmatpush1.xpose.msra.mxu0 0.0
    %639 = vmatprep.subr.mxu0 0.0
    %640 = vmatpush1.xpose.msra.mxu0 0.0
    %641 = vmatprep.subr.mxu0 0.0
    %642 = vmatpush1.xpose.msra.mxu0 0.0
    %643 = vmatprep.mubr.f32.mxu0 0.0
    %644 = vmatmul.mubr.f32.gmra.mrb[0].mxu0 %v575
    %v645 = vpop.f32.mrb[0].mxu0
    %v646 = vadd.f32 %v161, %v645
    %v647 = vpop.f32.mrb[0].mxu0
    %648 = vdwg.mxu0
    %v649 = vsel %vm165, %v568, -inf
    %650 = vmax.xlane.f32.xlu0 %v649
    %v651 = vpop.xlane.xlu0 %650
    %v652 = vsel %vm165, %v646, -inf
    %653 = vmax.xlane.f32.xlu0 %v652
    %v654 = vpop.xlane.xlu0 %653
    %v655 = vsub.f32 %v568, %v651
    %v656 = vsub.f32 %v646, %v654
    %v657 = vmul.f32 %v655, 1.442695
    %v658 = vpow.pop %v657
    %v659 = vmul.f32 %v656, 1.442695
    %v660 = vpow.pop %v659
    %v661 = vsel %vm165, %v658, 0.0
    %662 = vadd.xlane.f32.xlu0 %v661
    %v663 = vpop.xlane.xlu0 %662
    %v664 = vsel %vm165, %v660, 0.0
    %665 = vadd.xlane.f32.xlu0 %v664
    %v666 = vpop.xlane.xlu0 %665
    %v667 = vrcp.pop %v663
    %v668 = vrcp.pop %v666
    %v669 = vmul.f32 %v658, %v667
    %v670 = vmul.f32 %v660, %v668
    %671 = vrot.lane.b32.xlu0 %v142, 56
    %v672 = vpop.permute.xlu0 %671
    %v675 = vsel %vm165, %v669, 0
    %677 = vmatprep.subr.mxu0 0.0
    %678 = vmatpush1.msra.mxu0 %v672
    %679 = vmatprep.subr.mxu0 0.0
    %680 = vmatpush1.msra.mxu0 0.0
    %681 = vmatprep.subr.mxu0 0.0
    %682 = vmatpush1.msra.mxu0 0.0
    %683 = vmatprep.subr.mxu0 0.0
    %684 = vmatpush1.msra.mxu0 0.0
    %685 = vmatprep.subr.mxu0 0.0
    %686 = vmatpush1.msra.mxu0 0.0
    %687 = vmatprep.subr.mxu0 0.0
    %688 = vmatpush1.msra.mxu0 0.0
    %689 = vmatprep.subr.mxu0 0.0
    %690 = vmatpush1.msra.mxu0 0.0
    %691 = vmatprep.subr.mxu0 0.0
    %692 = vmatpush1.msra.mxu0 0.0
    %693 = vmatprep.subr.mxu0 0.0
    %694 = vmatpush1.msra.mxu0 0.0
    %695 = vmatprep.subr.mxu0 0.0
    %696 = vmatpush1.msra.mxu0 0.0
    %697 = vmatprep.subr.mxu0 0.0
    %698 = vmatpush1.msra.mxu0 0.0
    %699 = vmatprep.subr.mxu0 0.0
    %700 = vmatpush1.msra.mxu0 0.0
    %701 = vmatprep.subr.mxu0 0.0
    %702 = vmatpush1.msra.mxu0 0.0
    %703 = vmatprep.subr.mxu0 0.0
    %704 = vmatpush1.msra.mxu0 0.0
    %705 = vmatprep.subr.mxu0 0.0
    %706 = vmatpush1.msra.mxu0 0.0
    %707 = vmatprep.subr.mxu0 0.0
    %708 = vmatpush1.msra.mxu0 0.0
    %709 = vmatprep.subr.mxu0 0.0
    %710 = vmatpush1.msra.mxu0 0.0
    %711 = vmatprep.subr.mxu0 0.0
    %712 = vmatpush1.msra.mxu0 0.0
    %713 = vmatprep.subr.mxu0 0.0
    %714 = vmatpush1.msra.mxu0 0.0
    %715 = vmatprep.subr.mxu0 0.0
    %716 = vmatpush1.msra.mxu0 0.0
    %717 = vmatprep.subr.mxu0 0.0
    %718 = vmatpush1.msra.mxu0 0.0
    %719 = vmatprep.subr.mxu0 0.0
    %720 = vmatpush1.msra.mxu0 0.0
    %721 = vmatprep.subr.mxu0 0.0
    %722 = vmatpush1.msra.mxu0 0.0
    %723 = vmatprep.subr.mxu0 0.0
    %724 = vmatpush1.msra.mxu0 0.0
    %725 = vmatprep.subr.mxu0 0.0
    %726 = vmatpush1.msra.mxu0 0.0
    %727 = vmatprep.subr.mxu0 0.0
    %728 = vmatpush1.msra.mxu0 0.0
    %729 = vmatprep.subr.mxu0 0.0
    %730 = vmatpush1.msra.mxu0 0.0
    %731 = vmatprep.subr.mxu0 0.0
    %732 = vmatpush1.msra.mxu0 0.0
    %733 = vmatprep.subr.mxu0 0.0
    %734 = vmatpush1.msra.mxu0 0.0
    %735 = vmatprep.subr.mxu0 0.0
    %736 = vmatpush1.msra.mxu0 0.0
    %737 = vmatprep.subr.mxu0 0.0
    %738 = vmatpush1.msra.mxu0 0.0
    %739 = vmatprep.subr.mxu0 0.0
    %740 = vmatpush1.msra.mxu0 0.0
    %741 = vmatprep.mubr.f32.mxu0 0.0
    %742 = vmatmul.mubr.f32.gmra.mrb[0].mxu0 %v675
    %v743 = vpop.f32.mrb[0].mxu0
    %v744 = vadd.f32 0.0, %v743
    %v745 = vpop.f32.mrb[0].mxu0
    %746 = vdwg.mxu0
    %747 = vrot.lane.b32.xlu0 %v147, 56
    %v748 = vpop.permute.xlu0 %747
    %v751 = vsel %vm165, %v670, 0
    %753 = vmatprep.subr.mxu0 0.0
    %754 = vmatpush1.msra.mxu0 %v748
    %755 = vmatprep.subr.mxu0 0.0
    %756 = vmatpush1.msra.mxu0 0.0
    %757 = vmatprep.subr.mxu0 0.0
    %758 = vmatpush1.msra.mxu0 0.0
    %759 = vmatprep.subr.mxu0 0.0
    %760 = vmatpush1.msra.mxu0 0.0
    %761 = vmatprep.subr.mxu0 0.0
    %762 = vmatpush1.msra.mxu0 0.0
    %763 = vmatprep.subr.mxu0 0.0
    %764 = vmatpush1.msra.mxu0 0.0
    %765 = vmatprep.subr.mxu0 0.0
    %766 = vmatpush1.msra.mxu0 0.0
    %767 = vmatprep.subr.mxu0 0.0
    %768 = vmatpush1.msra.mxu0 0.0
    %769 = vmatprep.subr.mxu0 0.0
    %770 = vmatpush1.msra.mxu0 0.0
    %771 = vmatprep.subr.mxu0 0.0
    %772 = vmatpush1.msra.mxu0 0.0
    %773 = vmatprep.subr.mxu0 0.0
    %774 = vmatpush1.msra.mxu0 0.0
    %775 = vmatprep.subr.mxu0 0.0
    %776 = vmatpush1.msra.mxu0 0.0
    %777 = vmatprep.subr.mxu0 0.0
    %778 = vmatpush1.msra.mxu0 0.0
    %779 = vmatprep.subr.mxu0 0.0
    %780 = vmatpush1.msra.mxu0 0.0
    %781 = vmatprep.subr.mxu0 0.0
    %782 = vmatpush1.msra.mxu0 0.0
    %783 = vmatprep.subr.mxu0 0.0
    %784 = vmatpush1.msra.mxu0 0.0
    %785 = vmatprep.subr.mxu0 0.0
    %786 = vmatpush1.msra.mxu0 0.0
    %787 = vmatprep.subr.mxu0 0.0
    %788 = vmatpush1.msra.mxu0 0.0
    %789 = vmatprep.subr.mxu0 0.0
    %790 = vmatpush1.msra.mxu0 0.0
    %791 = vmatprep.subr.mxu0 0.0
    %792 = vmatpush1.msra.mxu0 0.0
    %793 = vmatprep.subr.mxu0 0.0
    %794 = vmatpush1.msra.mxu0 0.0
    %795 = vmatprep.subr.mxu0 0.0
    %796 = vmatpush1.msra.mxu0 0.0
    %797 = vmatprep.subr.mxu0 0.0
    %798 = vmatpush1.msra.mxu0 0.0
    %799 = vmatprep.subr.mxu0 0.0
    %800 = vmatpush1.msra.mxu0 0.0
    %801 = vmatprep.subr.mxu0 0.0
    %802 = vmatpush1.msra.mxu0 0.0
    %803 = vmatprep.subr.mxu0 0.0
    %804 = vmatpush1.msra.mxu0 0.0
    %805 = vmatprep.subr.mxu0 0.0
    %806 = vmatpush1.msra.mxu0 0.0
    %807 = vmatprep.subr.mxu0 0.0
    %808 = vmatpush1.msra.mxu0 0.0
    %809 = vmatprep.subr.mxu0 0.0
    %810 = vmatpush1.msra.mxu0 0.0
    %811 = vmatprep.subr.mxu0 0.0
    %812 = vmatpush1.msra.mxu0 0.0
    %813 = vmatprep.subr.mxu0 0.0
    %814 = vmatpush1.msra.mxu0 0.0
    %815 = vmatprep.subr.mxu0 0.0
    %816 = vmatpush1.msra.mxu0 0.0
    %817 = vmatprep.mubr.f32.mxu0 0.0
    %818 = vmatmul.mubr.f32.gmra.mrb[0].mxu0 %v751
    %v819 = vpop.f32.mrb[0].mxu0
    %v820 = vadd.f32 0.0, %v819
    %v821 = vpop.f32.mrb[0].mxu0
    %822 = vdwg.mxu0
    %823 = vrot.lane.b32.xlu0 %v159, 112
    %v824 = vpop.permute.xlu0 %823
    %825 = vrot.lane.b32.xlu0 %v142, 80
    %v826 = vpop.permute.xlu0 %825
    %v827 = vsel %vm165, %v824, 0
    %v829 = vsel %vm165, %v826, 0
    %831 = vmatprep.subr.mxu0 0.0
    %832 = vmatpush1.xpose.msra.mxu0 %v829
    %833 = vmatprep.subr.mxu0 0.0
    %834 = vmatpush1.xpose.msra.mxu0 0.0
    %835 = vmatprep.subr.mxu0 0.0
    %836 = vmatpush1.xpose.msra.mxu0 0.0
    %837 = vmatprep.subr.mxu0 0.0
    %838 = vmatpush1.xpose.msra.mxu0 0.0
    %839 = vmatprep.subr.mxu0 0.0
    %840 = vmatpush1.xpose.msra.mxu0 0.0
    %841 = vmatprep.subr.mxu0 0.0
    %842 = vmatpush1.xpose.msra.mxu0 0.0
    %843 = vmatprep.subr.mxu0 0.0
    %844 = vmatpush1.xpose.msra.mxu0 0.0
    %845 = vmatprep.subr.mxu0 0.0
    %846 = vmatpush1.xpose.msra.mxu0 0.0
    %847 = vmatprep.subr.mxu0 0.0
    %848 = vmatpush1.xpose.msra.mxu0 0.0
    %849 = vmatprep.subr.mxu0 0.0
    %850 = vmatpush1.xpose.msra.mxu0 0.0
    %851 = vmatprep.subr.mxu0 0.0
    %852 = vmatpush1.xpose.msra.mxu0 0.0
    %853 = vmatprep.subr.mxu0 0.0
    %854 = vmatpush1.xpose.msra.mxu0 0.0
    %855 = vmatprep.subr.mxu0 0.0
    %856 = vmatpush1.xpose.msra.mxu0 0.0
    %857 = vmatprep.subr.mxu0 0.0
    %858 = vmatpush1.xpose.msra.mxu0 0.0
    %859 = vmatprep.subr.mxu0 0.0
    %860 = vmatpush1.xpose.msra.mxu0 0.0
    %861 = vmatprep.subr.mxu0 0.0
    %862 = vmatpush1.xpose.msra.mxu0 0.0
    %863 = vmatprep.subr.mxu0 0.0
    %864 = vmatpush1.xpose.msra.mxu0 0.0
    %865 = vmatprep.subr.mxu0 0.0
    %866 = vmatpush1.xpose.msra.mxu0 0.0
    %867 = vmatprep.subr.mxu0 0.0
    %868 = vmatpush1.xpose.msra.mxu0 0.0
    %869 = vmatprep.subr.mxu0 0.0
    %870 = vmatpush1.xpose.msra.mxu0 0.0
    %871 = vmatprep.subr.mxu0 0.0
    %872 = vmatpush1.xpose.msra.mxu0 0.0
    %873 = vmatprep.subr.mxu0 0.0
    %874 = vmatpush1.xpose.msra.mxu0 0.0
    %875 = vmatprep.subr.mxu0 0.0
    %876 = vmatpush1.xpose.msra.mxu0 0.0
    %877 = vmatprep.subr.mxu0 0.0
    %878 = vmatpush1.xpose.msra.mxu0 0.0
    %879 = vmatprep.subr.mxu0 0.0
    %880 = vmatpush1.xpose.msra.mxu0 0.0
    %881 = vmatprep.subr.mxu0 0.0
    %882 = vmatpush1.xpose.msra.mxu0 0.0
    %883 = vmatprep.subr.mxu0 0.0
    %884 = vmatpush1.xpose.msra.mxu0 0.0
    %885 = vmatprep.subr.mxu0 0.0
    %886 = vmatpush1.xpose.msra.mxu0 0.0
    %887 = vmatprep.subr.mxu0 0.0
    %888 = vmatpush1.xpose.msra.mxu0 0.0
    %889 = vmatprep.subr.mxu0 0.0
    %890 = vmatpush1.xpose.msra.mxu0 0.0
    %891 = vmatprep.subr.mxu0 0.0
    %892 = vmatpush1.xpose.msra.mxu0 0.0
    %893 = vmatprep.subr.mxu0 0.0
    %894 = vmatpush1.xpose.msra.mxu0 0.0
    %895 = vmatprep.mubr.f32.mxu0 0.0
    %896 = vmatmul.mubr.f32.gmra.mrb[0].mxu0 %v827
    %v897 = vpop.f32.mrb[0].mxu0
    %v898 = vadd.f32 %v161, %v897
    %v899 = vpop.f32.mrb[0].mxu0
    %900 = vdwg.mxu0
    %901 = vrot.lane.b32.xlu0 %v160, 112
    %v902 = vpop.permute.xlu0 %901
    %903 = vrot.lane.b32.xlu0 %v147, 80
    %v904 = vpop.permute.xlu0 %903
    %v905 = vsel %vm165, %v902, 0
    %v907 = vsel %vm165, %v904, 0
    %909 = vmatprep.subr.mxu0 0.0
    %910 = vmatpush1.xpose.msra.mxu0 %v907
    %911 = vmatprep.subr.mxu0 0.0
    %912 = vmatpush1.xpose.msra.mxu0 0.0
    %913 = vmatprep.subr.mxu0 0.0
    %914 = vmatpush1.xpose.msra.mxu0 0.0
    %915 = vmatprep.subr.mxu0 0.0
    %916 = vmatpush1.xpose.msra.mxu0 0.0
    %917 = vmatprep.subr.mxu0 0.0
    %918 = vmatpush1.xpose.msra.mxu0 0.0
    %919 = vmatprep.subr.mxu0 0.0
    %920 = vmatpush1.xpose.msra.mxu0 0.0
    %921 = vmatprep.subr.mxu0 0.0
    %922 = vmatpush1.xpose.msra.mxu0 0.0
    %923 = vmatprep.subr.mxu0 0.0
    %924 = vmatpush1.xpose.msra.mxu0 0.0
    %925 = vmatprep.subr.mxu0 0.0
    %926 = vmatpush1.xpose.msra.mxu0 0.0
    %927 = vmatprep.subr.mxu0 0.0
    %928 = vmatpush1.xpose.msra.mxu0 0.0
    %929 = vmatprep.subr.mxu0 0.0
    %930 = vmatpush1.xpose.msra.mxu0 0.0
    %931 = vmatprep.subr.mxu0 0.0
    %932 = vmatpush1.xpose.msra.mxu0 0.0
    %933 = vmatprep.subr.mxu0 0.0
    %934 = vmatpush1.xpose.msra.mxu0 0.0
    %935 = vmatprep.subr.mxu0 0.0
    %936 = vmatpush1.xpose.msra.mxu0 0.0
    %937 = vmatprep.subr.mxu0 0.0
    %938 = vmatpush1.xpose.msra.mxu0 0.0
    %939 = vmatprep.subr.mxu0 0.0
    %940 = vmatpush1.xpose.msra.mxu0 0.0
    %941 = vmatprep.subr.mxu0 0.0
    %942 = vmatpush1.xpose.msra.mxu0 0.0
    %943 = vmatprep.subr.mxu0 0.0
    %944 = vmatpush1.xpose.msra.mxu0 0.0
    %945 = vmatprep.subr.mxu0 0.0
    %946 = vmatpush1.xpose.msra.mxu0 0.0
    %947 = vmatprep.subr.mxu0 0.0
    %948 = vmatpush1.xpose.msra.mxu0 0.0
    %949 = vmatprep.subr.mxu0 0.0
    %950 = vmatpush1.xpose.msra.mxu0 0.0
    %951 = vmatprep.subr.mxu0 0.0
    %952 = vmatpush1.xpose.msra.mxu0 0.0
    %953 = vmatprep.subr.mxu0 0.0
    %954 = vmatpush1.xpose.msra.mxu0 0.0
    %955 = vmatprep.subr.mxu0 0.0
    %956 = vmatpush1.xpose.msra.mxu0 0.0
    %957 = vmatprep.subr.mxu0 0.0
    %958 = vmatpush1.xpose.msra.mxu0 0.0
    %959 = vmatprep.subr.mxu0 0.0
    %960 = vmatpush1.xpose.msra.mxu0 0.0
    %961 = vmatprep.subr.mxu0 0.0
    %962 = vmatpush1.xpose.msra.mxu0 0.0
    %963 = vmatprep.subr.mxu0 0.0
    %964 = vmatpush1.xpose.msra.mxu0 0.0
    %965 = vmatprep.subr.mxu0 0.0
    %966 = vmatpush1.xpose.msra.mxu0 0.0
    %967 = vmatprep.subr.mxu0 0.0
    %968 = vmatpush1.xpose.msra.mxu0 0.0
    %969 = vmatprep.subr.mxu0 0.0
    %970 = vmatpush1.xpose.msra.mxu0 0.0
    %971 = vmatprep.subr.mxu0 0.0
    %972 = vmatpush1.xpose.msra.mxu0 0.0
    %973 = vmatprep.mubr.f32.mxu0 0.0
    %974 = vmatmul.mubr.f32.gmra.mrb[0].mxu0 %v905
    %v975 = vpop.f32.mrb[0].mxu0
    %v976 = vadd.f32 %v161, %v975
    %v977 = vpop.f32.mrb[0].mxu0
    %978 = vdwg.mxu0
    %v979 = vsel %vm165, %v898, -inf
    %980 = vmax.xlane.f32.xlu0 %v979
    %v981 = vpop.xlane.xlu0 %980
    %v982 = vsel %vm165, %v976, -inf
    %983 = vmax.xlane.f32.xlu0 %v982
    %v984 = vpop.xlane.xlu0 %983
    %v985 = vsub.f32 %v898, %v981
    %v986 = vsub.f32 %v976, %v984
    %v987 = vmul.f32 %v985, 1.442695
    %v988 = vpow.pop %v987
    %v989 = vmul.f32 %v986, 1.442695
    %v990 = vpow.pop %v989
    %v991 = vsel %vm165, %v988, 0.0
    %992 = vadd.xlane.f32.xlu0 %v991
    %v993 = vpop.xlane.xlu0 %992
    %v994 = vsel %vm165, %v990, 0.0
    %995 = vadd.xlane.f32.xlu0 %v994
    %v996 = vpop.xlane.xlu0 %995
    %v997 = vrcp.pop %v993
    %v998 = vrcp.pop %v996
    %v999 = vmul.f32 %v988, %v997
    %v1000 = vmul.f32 %v990, %v998
    %1001 = vrot.lane.b32.xlu0 %v142, 48
    %v1002 = vpop.permute.xlu0 %1001
    %v1005 = vsel %vm165, %v999, 0
    %1007 = vmatprep.subr.mxu0 0.0
    %1008 = vmatpush1.msra.mxu0 %v1002
    %1009 = vmatprep.subr.mxu0 0.0
    %1010 = vmatpush1.msra.mxu0 0.0
    %1011 = vmatprep.subr.mxu0 0.0
    %1012 = vmatpush1.msra.mxu0 0.0
    %1013 = vmatprep.subr.mxu0 0.0
    %1014 = vmatpush1.msra.mxu0 0.0
    %1015 = vmatprep.subr.mxu0 0.0
    %1016 = vmatpush1.msra.mxu0 0.0
    %1017 = vmatprep.subr.mxu0 0.0
    %1018 = vmatpush1.msra.mxu0 0.0
    %1019 = vmatprep.subr.mxu0 0.0
    %1020 = vmatpush1.msra.mxu0 0.0
    %1021 = vmatprep.subr.mxu0 0.0
    %1022 = vmatpush1.msra.mxu0 0.0
    %1023 = vmatprep.subr.mxu0 0.0
    %1024 = vmatpush1.msra.mxu0 0.0
    %1025 = vmatprep.subr.mxu0 0.0
    %1026 = vmatpush1.msra.mxu0 0.0
    %1027 = vmatprep.subr.mxu0 0.0
    %1028 = vmatpush1.msra.mxu0 0.0
    %1029 = vmatprep.subr.mxu0 0.0
    %1030 = vmatpush1.msra.mxu0 0.0
    %1031 = vmatprep.subr.mxu0 0.0
    %1032 = vmatpush1.msra.mxu0 0.0
    %1033 = vmatprep.subr.mxu0 0.0
    %1034 = vmatpush1.msra.mxu0 0.0
    %1035 = vmatprep.subr.mxu0 0.0
    %1036 = vmatpush1.msra.mxu0 0.0
    %1037 = vmatprep.subr.mxu0 0.0
    %1038 = vmatpush1.msra.mxu0 0.0
    %1039 = vmatprep.subr.mxu0 0.0
    %1040 = vmatpush1.msra.mxu0 0.0
    %1041 = vmatprep.subr.mxu0 0.0
    %1042 = vmatpush1.msra.mxu0 0.0
    %1043 = vmatprep.subr.mxu0 0.0
    %1044 = vmatpush1.msra.mxu0 0.0
    %1045 = vmatprep.subr.mxu0 0.0
    %1046 = vmatpush1.msra.mxu0 0.0
    %1047 = vmatprep.subr.mxu0 0.0
    %1048 = vmatpush1.msra.mxu0 0.0
    %1049 = vmatprep.subr.mxu0 0.0
    %1050 = vmatpush1.msra.mxu0 0.0
    %1051 = vmatprep.subr.mxu0 0.0
    %1052 = vmatpush1.msra.mxu0 0.0
    %1053 = vmatprep.subr.mxu0 0.0
    %1054 = vmatpush1.msra.mxu0 0.0
    %1055 = vmatprep.subr.mxu0 0.0
    %1056 = vmatpush1.msra.mxu0 0.0
    %1057 = vmatprep.subr.mxu0 0.0
    %1058 = vmatpush1.msra.mxu0 0.0
    %1059 = vmatprep.subr.mxu0 0.0
    %1060 = vmatpush1.msra.mxu0 0.0
    %1061 = vmatprep.subr.mxu0 0.0
    %1062 = vmatpush1.msra.mxu0 0.0
    %1063 = vmatprep.subr.mxu0 0.0
    %1064 = vmatpush1.msra.mxu0 0.0
    %1065 = vmatprep.subr.mxu0 0.0
    %1066 = vmatpush1.msra.mxu0 0.0
    %1067 = vmatprep.subr.mxu0 0.0
    %1068 = vmatpush1.msra.mxu0 0.0
    %1069 = vmatprep.subr.mxu0 0.0
    %1070 = vmatpush1.msra.mxu0 0.0
    %1071 = vmatprep.mubr.f32.mxu0 0.0
    %1072 = vmatmul.mubr.f32.gmra.mrb[0].mxu0 %v1005
    %v1073 = vpop.f32.mrb[0].mxu0
    %v1074 = vadd.f32 0.0, %v1073
    %v1075 = vpop.f32.mrb[0].mxu0
    %1076 = vdwg.mxu0
    %1077 = vrot.lane.b32.xlu0 %v147, 48
    %v1078 = vpop.permute.xlu0 %1077
    %v1081 = vsel %vm165, %v1000, 0
    %1083 = vmatprep.subr.mxu0 0.0
    %1084 = vmatpush1.msra.mxu0 %v1078
    %1085 = vmatprep.subr.mxu0 0.0
    %1086 = vmatpush1.msra.mxu0 0.0
    %1087 = vmatprep.subr.mxu0 0.0
    %1088 = vmatpush1.msra.mxu0 0.0
    %1089 = vmatprep.subr.mxu0 0.0
    %1090 = vmatpush1.msra.mxu0 0.0
    %1091 = vmatprep.subr.mxu0 0.0
    %1092 = vmatpush1.msra.mxu0 0.0
    %1093 = vmatprep.subr.mxu0 0.0
    %1094 = vmatpush1.msra.mxu0 0.0
    %1095 = vmatprep.subr.mxu0 0.0
    %1096 = vmatpush1.msra.mxu0 0.0
    %1097 = vmatprep.subr.mxu0 0.0
    %1098 = vmatpush1.msra.mxu0 0.0
    %1099 = vmatprep.subr.mxu0 0.0
    %1100 = vmatpush1.msra.mxu0 0.0
    %1101 = vmatprep.subr.mxu0 0.0
    %1102 = vmatpush1.msra.mxu0 0.0
    %1103 = vmatprep.subr.mxu0 0.0
    %1104 = vmatpush1.msra.mxu0 0.0
    %1105 = vmatprep.subr.mxu0 0.0
    %1106 = vmatpush1.msra.mxu0 0.0
    %1107 = vmatprep.subr.mxu0 0.0
    %1108 = vmatpush1.msra.mxu0 0.0
    %1109 = vmatprep.subr.mxu0 0.0
    %1110 = vmatpush1.msra.mxu0 0.0
    %1111 = vmatprep.subr.mxu0 0.0
    %1112 = vmatpush1.msra.mxu0 0.0
    %1113 = vmatprep.subr.mxu0 0.0
    %1114 = vmatpush1.msra.mxu0 0.0
    %1115 = vmatprep.subr.mxu0 0.0
    %1116 = vmatpush1.msra.mxu0 0.0
    %1117 = vmatprep.subr.mxu0 0.0
    %1118 = vmatpush1.msra.mxu0 0.0
    %1119 = vmatprep.subr.mxu0 0.0
    %1120 = vmatpush1.msra.mxu0 0.0
    %1121 = vmatprep.subr.mxu0 0.0
    %1122 = vmatpush1.msra.mxu0 0.0
    %1123 = vmatprep.subr.mxu0 0.0
    %1124 = vmatpush1.msra.mxu0 0.0
    %1125 = vmatprep.subr.mxu0 0.0
    %1126 = vmatpush1.msra.mxu0 0.0
    %1127 = vmatprep.subr.mxu0 0.0
    %1128 = vmatpush1.msra.mxu0 0.0
    %1129 = vmatprep.subr.mxu0 0.0
    %1130 = vmatpush1.msra.mxu0 0.0
    %1131 = vmatprep.subr.mxu0 0.0
    %1132 = vmatpush1.msra.mxu0 0.0
    %1133 = vmatprep.subr.mxu0 0.0
    %1134 = vmatpush1.msra.mxu0 0.0
    %1135 = vmatprep.subr.mxu0 0.0
    %1136 = vmatpush1.msra.mxu0 0.0
    %1137 = vmatprep.subr.mxu0 0.0
    %1138 = vmatpush1.msra.mxu0 0.0
    %1139 = vmatprep.subr.mxu0 0.0
    %1140 = vmatpush1.msra.mxu0 0.0
    %1141 = vmatprep.subr.mxu0 0.0
    %1142 = vmatpush1.msra.mxu0 0.0
    %1143 = vmatprep.subr.mxu0 0.0
    %1144 = vmatpush1.msra.mxu0 0.0
    %1145 = vmatprep.subr.mxu0 0.0
    %1146 = vmatpush1.msra.mxu0 0.0
    %1147 = vmatprep.mubr.f32.mxu0 0.0
    %1148 = vmatmul.mubr.f32.gmra.mrb[0].mxu0 %v1081
    %v1149 = vpop.f32.mrb[0].mxu0
    %v1150 = vadd.f32 0.0, %v1149
    %v1151 = vpop.f32.mrb[0].mxu0
    %1152 = vdwg.mxu0
    %1153 = vrot.lane.b32.xlu0 %v159, 104
    %v1154 = vpop.permute.xlu0 %1153
    %1155 = vrot.lane.b32.xlu0 %v142, 72
    %v1156 = vpop.permute.xlu0 %1155
    %v1157 = vsel %vm165, %v1154, 0
    %v1159 = vsel %vm165, %v1156, 0
    %1161 = vmatprep.subr.mxu0 0.0
    %1162 = vmatpush1.xpose.msra.mxu0 %v1159
    %1163 = vmatprep.subr.mxu0 0.0
    %1164 = vmatpush1.xpose.msra.mxu0 0.0
    %1165 = vmatprep.subr.mxu0 0.0
    %1166 = vmatpush1.xpose.msra.mxu0 0.0
    %1167 = vmatprep.subr.mxu0 0.0
    %1168 = vmatpush1.xpose.msra.mxu0 0.0
    %1169 = vmatprep.subr.mxu0 0.0
    %1170 = vmatpush1.xpose.msra.mxu0 0.0
    %1171 = vmatprep.subr.mxu0 0.0
    %1172 = vmatpush1.xpose.msra.mxu0 0.0
    %1173 = vmatprep.subr.mxu0 0.0
    %1174 = vmatpush1.xpose.msra.mxu0 0.0
    %1175 = vmatprep.subr.mxu0 0.0
    %1176 = vmatpush1.xpose.msra.mxu0 0.0
    %1177 = vmatprep.subr.mxu0 0.0
    %1178 = vmatpush1.xpose.msra.mxu0 0.0
    %1179 = vmatprep.subr.mxu0 0.0
    %1180 = vmatpush1.xpose.msra.mxu0 0.0
    %1181 = vmatprep.subr.mxu0 0.0
    %1182 = vmatpush1.xpose.msra.mxu0 0.0
    %1183 = vmatprep.subr.mxu0 0.0
    %1184 = vmatpush1.xpose.msra.mxu0 0.0
    %1185 = vmatprep.subr.mxu0 0.0
    %1186 = vmatpush1.xpose.msra.mxu0 0.0
    %1187 = vmatprep.subr.mxu0 0.0
    %1188 = vmatpush1.xpose.msra.mxu0 0.0
    %1189 = vmatprep.subr.mxu0 0.0
    %1190 = vmatpush1.xpose.msra.mxu0 0.0
    %1191 = vmatprep.subr.mxu0 0.0
    %1192 = vmatpush1.xpose.msra.mxu0 0.0
    %1193 = vmatprep.subr.mxu0 0.0
    %1194 = vmatpush1.xpose.msra.mxu0 0.0
    %1195 = vmatprep.subr.mxu0 0.0
    %1196 = vmatpush1.xpose.msra.mxu0 0.0
    %1197 = vmatprep.subr.mxu0 0.0
    %1198 = vmatpush1.xpose.msra.mxu0 0.0
    %1199 = vmatprep.subr.mxu0 0.0
    %1200 = vmatpush1.xpose.msra.mxu0 0.0
    %1201 = vmatprep.subr.mxu0 0.0
    %1202 = vmatpush1.xpose.msra.mxu0 0.0
    %1203 = vmatprep.subr.mxu0 0.0
    %1204 = vmatpush1.xpose.msra.mxu0 0.0
    %1205 = vmatprep.subr.mxu0 0.0
    %1206 = vmatpush1.xpose.msra.mxu0 0.0
    %1207 = vmatprep.subr.mxu0 0.0
    %1208 = vmatpush1.xpose.msra.mxu0 0.0
    %1209 = vmatprep.subr.mxu0 0.0
    %1210 = vmatpush1.xpose.msra.mxu0 0.0
    %1211 = vmatprep.subr.mxu0 0.0
    %1212 = vmatpush1.xpose.msra.mxu0 0.0
    %1213 = vmatprep.subr.mxu0 0.0
    %1214 = vmatpush1.xpose.msra.mxu0 0.0
    %1215 = vmatprep.subr.mxu0 0.0
    %1216 = vmatpush1.xpose.msra.mxu0 0.0
    %1217 = vmatprep.subr.mxu0 0.0
    %1218 = vmatpush1.xpose.msra.mxu0 0.0
    %1219 = vmatprep.subr.mxu0 0.0
    %1220 = vmatpush1.xpose.msra.mxu0 0.0
    %1221 = vmatprep.subr.mxu0 0.0
    %1222 = vmatpush1.xpose.msra.mxu0 0.0
    %1223 = vmatprep.subr.mxu0 0.0
    %1224 = vmatpush1.xpose.msra.mxu0 0.0
    %1225 = vmatprep.mubr.f32.mxu0 0.0
    %1226 = vmatmul.mubr.f32.gmra.mrb[0].mxu0 %v1157
    %v1227 = vpop.f32.mrb[0].mxu0
    %v1228 = vadd.f32 %v161, %v1227
    %v1229 = vpop.f32.mrb[0].mxu0
    %1230 = vdwg.mxu0
    %1231 = vrot.lane.b32.xlu0 %v160, 104
    %v1232 = vpop.permute.xlu0 %1231
    %1233 = vrot.lane.b32.xlu0 %v147, 72
    %v1234 = vpop.permute.xlu0 %1233
    %v1235 = vsel %vm165, %v1232, 0
    %v1237 = vsel %vm165, %v1234, 0
    %1239 = vmatprep.subr.mxu0 0.0
    %1240 = vmatpush1.xpose.msra.mxu0 %v1237
    %1241 = vmatprep.subr.mxu0 0.0
    %1242 = vmatpush1.xpose.msra.mxu0 0.0
    %1243 = vmatprep.subr.mxu0 0.0
    %1244 = vmatpush1.xpose.msra.mxu0 0.0
    %1245 = vmatprep.subr.mxu0 0.0
    %1246 = vmatpush1.xpose.msra.mxu0 0.0
    %1247 = vmatprep.subr.mxu0 0.0
    %1248 = vmatpush1.xpose.msra.mxu0 0.0
    %1249 = vmatprep.subr.mxu0 0.0
    %1250 = vmatpush1.xpose.msra.mxu0 0.0
    %1251 = vmatprep.subr.mxu0 0.0
    %1252 = vmatpush1.xpose.msra.mxu0 0.0
    %1253 = vmatprep.subr.mxu0 0.0
    %1254 = vmatpush1.xpose.msra.mxu0 0.0
    %1255 = vmatprep.subr.mxu0 0.0
    %1256 = vmatpush1.xpose.msra.mxu0 0.0
    %1257 = vmatprep.subr.mxu0 0.0
    %1258 = vmatpush1.xpose.msra.mxu0 0.0
    %1259 = vmatprep.subr.mxu0 0.0
    %1260 = vmatpush1.xpose.msra.mxu0 0.0
    %1261 = vmatprep.subr.mxu0 0.0
    %1262 = vmatpush1.xpose.msra.mxu0 0.0
    %1263 = vmatprep.subr.mxu0 0.0
    %1264 = vmatpush1.xpose.msra.mxu0 0.0
    %1265 = vmatprep.subr.mxu0 0.0
    %1266 = vmatpush1.xpose.msra.mxu0 0.0
    %1267 = vmatprep.subr.mxu0 0.0
    %1268 = vmatpush1.xpose.msra.mxu0 0.0
    %1269 = vmatprep.subr.mxu0 0.0
    %1270 = vmatpush1.xpose.msra.mxu0 0.0
    %1271 = vmatprep.subr.mxu0 0.0
    %1272 = vmatpush1.xpose.msra.mxu0 0.0
    %1273 = vmatprep.subr.mxu0 0.0
    %1274 = vmatpush1.xpose.msra.mxu0 0.0
    %1275 = vmatprep.subr.mxu0 0.0
    %1276 = vmatpush1.xpose.msra.mxu0 0.0
    %1277 = vmatprep.subr.mxu0 0.0
    %1278 = vmatpush1.xpose.msra.mxu0 0.0
    %1279 = vmatprep.subr.mxu0 0.0
    %1280 = vmatpush1.xpose.msra.mxu0 0.0
    %1281 = vmatprep.subr.mxu0 0.0
    %1282 = vmatpush1.xpose.msra.mxu0 0.0
    %1283 = vmatprep.subr.mxu0 0.0
    %1284 = vmatpush1.xpose.msra.mxu0 0.0
    %1285 = vmatprep.subr.mxu0 0.0
    %1286 = vmatpush1.xpose.msra.mxu0 0.0
    %1287 = vmatprep.subr.mxu0 0.0
    %1288 = vmatpush1.xpose.msra.mxu0 0.0
    %1289 = vmatprep.subr.mxu0 0.0
    %1290 = vmatpush1.xpose.msra.mxu0 0.0
    %1291 = vmatprep.subr.mxu0 0.0
    %1292 = vmatpush1.xpose.msra.mxu0 0.0
    %1293 = vmatprep.subr.mxu0 0.0
    %1294 = vmatpush1.xpose.msra.mxu0 0.0
    %1295 = vmatprep.subr.mxu0 0.0
    %1296 = vmatpush1.xpose.msra.mxu0 0.0
    %1297 = vmatprep.subr.mxu0 0.0
    %1298 = vmatpush1.xpose.msra.mxu0 0.0
    %1299 = vmatprep.subr.mxu0 0.0
    %1300 = vmatpush1.xpose.msra.mxu0 0.0
    %1301 = vmatprep.subr.mxu0 0.0
    %1302 = vmatpush1.xpose.msra.mxu0 0.0
    %1303 = vmatprep.mubr.f32.mxu0 0.0
    %1304 = vmatmul.mubr.f32.gmra.mrb[0].mxu0 %v1235
    %v1305 = vpop.f32.mrb[0].mxu0
    %v1306 = vadd.f32 %v161, %v1305
    %v1307 = vpop.f32.mrb[0].mxu0
    %1308 = vdwg.mxu0
    %v1309 = vsel %vm165, %v1228, -inf
    %1310 = vmax.xlane.f32.xlu0 %v1309
    %v1311 = vpop.xlane.xlu0 %1310
    %v1312 = vsel %vm165, %v1306, -inf
    %1313 = vmax.xlane.f32.xlu0 %v1312
    %v1314 = vpop.xlane.xlu0 %1313
    %v1315 = vsub.f32 %v1228, %v1311
    %v1316 = vsub.f32 %v1306, %v1314
    %v1317 = vmul.f32 %v1315, 1.442695
    %v1318 = vpow.pop %v1317
    %v1319 = vmul.f32 %v1316, 1.442695
    %v1320 = vpow.pop %v1319
    %v1321 = vsel %vm165, %v1318, 0.0
    %1322 = vadd.xlane.f32.xlu0 %v1321
    %v1323 = vpop.xlane.xlu0 %1322
    %v1324 = vsel %vm165, %v1320, 0.0
    %1325 = vadd.xlane.f32.xlu0 %v1324
    %v1326 = vpop.xlane.xlu0 %1325
    %v1327 = vrcp.pop %v1323
    %v1328 = vrcp.pop %v1326
    %v1329 = vmul.f32 %v1318, %v1327
    %v1330 = vmul.f32 %v1320, %v1328
    %1331 = vrot.lane.b32.xlu0 %v142, 40
    %v1332 = vpop.permute.xlu0 %1331
    %v1335 = vsel %vm165, %v1329, 0
    %1337 = vmatprep.subr.mxu0 0.0
    %1338 = vmatpush1.msra.mxu0 %v1332
    %1339 = vmatprep.subr.mxu0 0.0
    %1340 = vmatpush1.msra.mxu0 0.0
    %1341 = vmatprep.subr.mxu0 0.0
    %1342 = vmatpush1.msra.mxu0 0.0
    %1343 = vmatprep.subr.mxu0 0.0
    %1344 = vmatpush1.msra.mxu0 0.0
    %1345 = vmatprep.subr.mxu0 0.0
    %1346 = vmatpush1.msra.mxu0 0.0
    %1347 = vmatprep.subr.mxu0 0.0
    %1348 = vmatpush1.msra.mxu0 0.0
    %1349 = vmatprep.subr.mxu0 0.0
    %1350 = vmatpush1.msra.mxu0 0.0
    %1351 = vmatprep.subr.mxu0 0.0
    %1352 = vmatpush1.msra.mxu0 0.0
    %1353 = vmatprep.subr.mxu0 0.0
    %1354 = vmatpush1.msra.mxu0 0.0
    %1355 = vmatprep.subr.mxu0 0.0
    %1356 = vmatpush1.msra.mxu0 0.0
    %1357 = vmatprep.subr.mxu0 0.0
    %1358 = vmatpush1.msra.mxu0 0.0
    %1359 = vmatprep.subr.mxu0 0.0
    %1360 = vmatpush1.msra.mxu0 0.0
    %1361 = vmatprep.subr.mxu0 0.0
    %1362 = vmatpush1.msra.mxu0 0.0
    %1363 = vmatprep.subr.mxu0 0.0
    %1364 = vmatpush1.msra.mxu0 0.0
    %1365 = vmatprep.subr.mxu0 0.0
    %1366 = vmatpush1.msra.mxu0 0.0
    %1367 = vmatprep.subr.mxu0 0.0
    %1368 = vmatpush1.msra.mxu0 0.0
    %1369 = vmatprep.subr.mxu0 0.0
    %1370 = vmatpush1.msra.mxu0 0.0
    %1371 = vmatprep.subr.mxu0 0.0
    %1372 = vmatpush1.msra.mxu0 0.0
    %1373 = vmatprep.subr.mxu0 0.0
    %1374 = vmatpush1.msra.mxu0 0.0
    %1375 = vmatprep.subr.mxu0 0.0
    %1376 = vmatpush1.msra.mxu0 0.0
    %1377 = vmatprep.subr.mxu0 0.0
    %1378 = vmatpush1.msra.mxu0 0.0
    %1379 = vmatprep.subr.mxu0 0.0
    %1380 = vmatpush1.msra.mxu0 0.0
    %1381 = vmatprep.subr.mxu0 0.0
    %1382 = vmatpush1.msra.mxu0 0.0
    %1383 = vmatprep.subr.mxu0 0.0
    %1384 = vmatpush1.msra.mxu0 0.0
    %1385 = vmatprep.subr.mxu0 0.0
    %1386 = vmatpush1.msra.mxu0 0.0
    %1387 = vmatprep.subr.mxu0 0.0
    %1388 = vmatpush1.msra.mxu0 0.0
    %1389 = vmatprep.subr.mxu0 0.0
    %1390 = vmatpush1.msra.mxu0 0.0
    %1391 = vmatprep.subr.mxu0 0.0
    %1392 = vmatpush1.msra.mxu0 0.0
    %1393 = vmatprep.subr.mxu0 0.0
    %1394 = vmatpush1.msra.mxu0 0.0
    %1395 = vmatprep.subr.mxu0 0.0
    %1396 = vmatpush1.msra.mxu0 0.0
    %1397 = vmatprep.subr.mxu0 0.0
    %1398 = vmatpush1.msra.mxu0 0.0
    %1399 = vmatprep.subr.mxu0 0.0
    %1400 = vmatpush1.msra.mxu0 0.0
    %1401 = vmatprep.mubr.f32.mxu0 0.0
    %1402 = vmatmul.mubr.f32.gmra.mrb[0].mxu0 %v1335
    %v1403 = vpop.f32.mrb[0].mxu0
    %v1404 = vadd.f32 0.0, %v1403
    %v1405 = vpop.f32.mrb[0].mxu0
    %1406 = vdwg.mxu0
    %1407 = vrot.lane.b32.xlu0 %v147, 40
    %v1408 = vpop.permute.xlu0 %1407
    %v1411 = vsel %vm165, %v1330, 0
    %1413 = vmatprep.subr.mxu0 0.0
    %1414 = vmatpush1.msra.mxu0 %v1408
    %1415 = vmatprep.subr.mxu0 0.0
    %1416 = vmatpush1.msra.mxu0 0.0
    %1417 = vmatprep.subr.mxu0 0.0
    %1418 = vmatpush1.msra.mxu0 0.0
    %1419 = vmatprep.subr.mxu0 0.0
    %1420 = vmatpush1.msra.mxu0 0.0
    %1421 = vmatprep.subr.mxu0 0.0
    %1422 = vmatpush1.msra.mxu0 0.0
    %1423 = vmatprep.subr.mxu0 0.0
    %1424 = vmatpush1.msra.mxu0 0.0
    %1425 = vmatprep.subr.mxu0 0.0
    %1426 = vmatpush1.msra.mxu0 0.0
    %1427 = vmatprep.subr.mxu0 0.0
    %1428 = vmatpush1.msra.mxu0 0.0
    %1429 = vmatprep.subr.mxu0 0.0
    %1430 = vmatpush1.msra.mxu0 0.0
    %1431 = vmatprep.subr.mxu0 0.0
    %1432 = vmatpush1.msra.mxu0 0.0
    %1433 = vmatprep.subr.mxu0 0.0
    %1434 = vmatpush1.msra.mxu0 0.0
    %1435 = vmatprep.subr.mxu0 0.0
    %1436 = vmatpush1.msra.mxu0 0.0
    %1437 = vmatprep.subr.mxu0 0.0
    %1438 = vmatpush1.msra.mxu0 0.0
    %1439 = vmatprep.subr.mxu0 0.0
    %1440 = vmatpush1.msra.mxu0 0.0
    %1441 = vmatprep.subr.mxu0 0.0
    %1442 = vmatpush1.msra.mxu0 0.0
    %1443 = vmatprep.subr.mxu0 0.0
    %1444 = vmatpush1.msra.mxu0 0.0
    %1445 = vmatprep.subr.mxu0 0.0
    %1446 = vmatpush1.msra.mxu0 0.0
    %1447 = vmatprep.subr.mxu0 0.0
    %1448 = vmatpush1.msra.mxu0 0.0
    %1449 = vmatprep.subr.mxu0 0.0
    %1450 = vmatpush1.msra.mxu0 0.0
    %1451 = vmatprep.subr.mxu0 0.0
    %1452 = vmatpush1.msra.mxu0 0.0
    %1453 = vmatprep.subr.mxu0 0.0
    %1454 = vmatpush1.msra.mxu0 0.0
    %1455 = vmatprep.subr.mxu0 0.0
    %1456 = vmatpush1.msra.mxu0 0.0
    %1457 = vmatprep.subr.mxu0 0.0
    %1458 = vmatpush1.msra.mxu0 0.0
    %1459 = vmatprep.subr.mxu0 0.0
    %1460 = vmatpush1.msra.mxu0 0.0
    %1461 = vmatprep.subr.mxu0 0.0
    %1462 = vmatpush1.msra.mxu0 0.0
    %1463 = vmatprep.subr.mxu0 0.0
    %1464 = vmatpush1.msra.mxu0 0.0
    %1465 = vmatprep.subr.mxu0 0.0
    %1466 = vmatpush1.msra.mxu0 0.0
    %1467 = vmatprep.subr.mxu0 0.0
    %1468 = vmatpush1.msra.mxu0 0.0
    %1469 = vmatprep.subr.mxu0 0.0
    %1470 = vmatpush1.msra.mxu0 0.0
    %1471 = vmatprep.subr.mxu0 0.0
    %1472 = vmatpush1.msra.mxu0 0.0
    %1473 = vmatprep.subr.mxu0 0.0
    %1474 = vmatpush1.msra.mxu0 0.0
    %1475 = vmatprep.subr.mxu0 0.0
    %1476 = vmatpush1.msra.mxu0 0.0
    %1477 = vmatprep.mubr.f32.mxu0 0.0
    %1478 = vmatmul.mubr.f32.gmra.mrb[0].mxu0 %v1411
    %v1479 = vpop.f32.mrb[0].mxu0
    %v1480 = vadd.f32 0.0, %v1479
    %v1481 = vpop.f32.mrb[0].mxu0
    %1482 = vdwg.mxu0
    %1485 = vrot.lane.b32.xlu0 %v744, 8
    %v1486 = vpop.permute.xlu0 %1485
    %1487 = vrot.lane.b32.xlu0 %v820, 8
    %v1488 = vpop.permute.xlu0 %1487
    %1493 = vrot.lane.b32.xlu0 %v1074, 16
    %v1494 = vpop.permute.xlu0 %1493
    %1495 = vrot.lane.b32.xlu0 %v1150, 16
    %v1496 = vpop.permute.xlu0 %1495
    %1501 = vrot.lane.b32.xlu0 %v1404, 24
    %v1502 = vpop.permute.xlu0 %1501
    %1503 = vrot.lane.b32.xlu0 %v1480, 24
    %v1504 = vpop.permute.xlu0 %1503
    %v1507 = vsel %vm165, %v414, %v1486
    %v1508 = vsel %vm165, %v490, %v1488
    %vm1509 = vcmask 130048
    %v1510 = vsel %vm1509, %v1507, %v1494
    %v1511 = vsel %vm1509, %v1508, %v1496
    %vm1512 = vcmask 195584
    %v1513 = vsel %vm1512, %v1510, %v1502
    %v1514 = vsel %vm1512, %v1511, %v1504
    %v1515 = vld [vmem:[%s5] sm:$0xff]
    %v1516 = vld [vmem:[%s5 + $0x8] sm:$0xff]
    %v1517 = vld [vmem:[%s5 + $0x10] sm:$0xff]
    %v1518 = vld [vmem:[%s5 + $0x18] sm:$0xff]
    %v1519 = vld [vmem:[%s6] sm:$0x1]
    %v1521 = vlaneseq
    %v1522 = vshrl.u32 %v1521, 7
    %v1523 = vsub.s32 0, %v1522
    %v1524 = vrot.slane %v1519, %v1523
    %v1527 = vsel %vm68, %v1513, 0
    %v1530 = vsel %vm68, %v1514, 0
    %1532 = vmatprep.subr.mxu0 0.0
    %1533 = vmatpush1.msra.mxu0 %v1515
    %1534 = vmatprep.subr.mxu0 0.0
    %1535 = vmatpush1.msra.mxu0 %v1516
    %1536 = vmatprep.subr.mxu0 0.0
    %1537 = vmatpush1.msra.mxu0 %v1517
    %1538 = vmatprep.subr.mxu0 0.0
    %1539 = vmatpush1.msra.mxu0 %v1518
    %1540 = vmatprep.subr.mxu0 0.0
    %1541 = vmatpush1.msra.mxu0 0.0
    %1542 = vmatprep.subr.mxu0 0.0
    %1543 = vmatpush1.msra.mxu0 0.0
    %1544 = vmatprep.subr.mxu0 0.0
    %1545 = vmatpush1.msra.mxu0 0.0
    %1546 = vmatprep.subr.mxu0 0.0
    %1547 = vmatpush1.msra.mxu0 0.0
    %1548 = vmatprep.subr.mxu0 0.0
    %1549 = vmatpush1.msra.mxu0 0.0
    %1550 = vmatprep.subr.mxu0 0.0
    %1551 = vmatpush1.msra.mxu0 0.0
    %1552 = vmatprep.subr.mxu0 0.0
    %1553 = vmatpush1.msra.mxu0 0.0
    %1554 = vmatprep.subr.mxu0 0.0
    %1555 = vmatpush1.msra.mxu0 0.0
    %1556 = vmatprep.subr.mxu0 0.0
    %1557 = vmatpush1.msra.mxu0 0.0
    %1558 = vmatprep.subr.mxu0 0.0
    %1559 = vmatpush1.msra.mxu0 0.0
    %1560 = vmatprep.subr.mxu0 0.0
    %1561 = vmatpush1.msra.mxu0 0.0
    %1562 = vmatprep.subr.mxu0 0.0
    %1563 = vmatpush1.msra.mxu0 0.0
    %1564 = vmatprep.subr.mxu0 0.0
    %1565 = vmatpush1.msra.mxu0 0.0
    %1566 = vmatprep.subr.mxu0 0.0
    %1567 = vmatpush1.msra.mxu0 0.0
    %1568 = vmatprep.subr.mxu0 0.0
    %1569 = vmatpush1.msra.mxu0 0.0
    %1570 = vmatprep.subr.mxu0 0.0
    %1571 = vmatpush1.msra.mxu0 0.0
    %1572 = vmatprep.subr.mxu0 0.0
    %1573 = vmatpush1.msra.mxu0 0.0
    %1574 = vmatprep.subr.mxu0 0.0
    %1575 = vmatpush1.msra.mxu0 0.0
    %1576 = vmatprep.subr.mxu0 0.0
    %1577 = vmatpush1.msra.mxu0 0.0
    %1578 = vmatprep.subr.mxu0 0.0
    %1579 = vmatpush1.msra.mxu0 0.0
    %1580 = vmatprep.subr.mxu0 0.0
    %1581 = vmatpush1.msra.mxu0 0.0
    %1582 = vmatprep.subr.mxu0 0.0
    %1583 = vmatpush1.msra.mxu0 0.0
    %1584 = vmatprep.subr.mxu0 0.0
    %1585 = vmatpush1.msra.mxu0 0.0
    %1586 = vmatprep.subr.mxu0 0.0
    %1587 = vmatpush1.msra.mxu0 0.0
    %1588 = vmatprep.subr.mxu0 0.0
    %1589 = vmatpush1.msra.mxu0 0.0
    %1590 = vmatprep.subr.mxu0 0.0
    %1591 = vmatpush1.msra.mxu0 0.0
    %1592 = vmatprep.subr.mxu0 0.0
    %1593 = vmatpush1.msra.mxu0 0.0
    %1594 = vmatprep.subr.mxu0 0.0
    %1595 = vmatpush1.msra.mxu0 0.0
    %1596 = vmatprep.mubr.f32.mxu0 0.0
    %1597 = vmatmul.mubr.f32.gmra.mrb[0].mxu0 %v1527
    %v1598 = vpop.f32.mrb[0].mxu0
    %v1599 = vadd.f32 %v1524, %v1598
    %v1600 = vpop.f32.mrb[0].mxu0
    %1601 = vmatprep.mubr.f32.mxu0 0.0
    %1602 = vmatmul.mubr.f32.gmra.mrb[0].mxu0 %v1530
    %v1603 = vpop.f32.mrb[0].mxu0
    %v1604 = vadd.f32 %v1524, %v1603
    %v1605 = vpop.f32.mrb[0].mxu0
    %1606 = vdwg.mxu0
    %1607 = vst.msk [vmem:[#allocation7] sm:$0xff] %vm68, %v1599
    %1608 = vst.msk [vmem:[#allocation7 + $0x8] sm:$0xff] %vm68, %v1604
    // Predicated region
    $region38: #{causal_temporal_attention.1} parent=1 // pred_check
      _
    $region39: #{causal_temporal_attention.1} parent=1 // pred_check_branch
      %1610 = sbr.rel (0) target = $region41
    $region40: #{causal_temporal_attention.1} parent=1 // pred_region
      %s1612 = ssub.s32 256, 256
      %1613 = vsyncadd [#allocation4], %s1612
      %s1614 = sshll.u32 [#allocation7], 4
      %s1615 = int_to_ptr.vmem [resolvable:$true] %s1614
      %1620 = dma.vmem_to_hbm [thread:$0]  %s1615, 256, %s7, [#allocation4], 128, 128, 8
    $region41: #{causal_temporal_attention.1} parent=1 // pred_fallthru
      _
    // Predicated region
    $region42: #{causal_temporal_attention.1} parent=1 // pred_check
      _
    $region43: #{causal_temporal_attention.1} parent=1 // pred_check_branch
      %1622 = sbr.rel (0) target = $region45
    $region44: #{causal_temporal_attention.1} parent=1 // pred_region
      %1623 = dma.done [#allocation4], 256
    $region45: #{causal_temporal_attention.1} parent=1 // pred_fallthru
      _
    %1624 = vsyncpa [#allocation3], 1
    %1625 = vsyncpa [#allocation6], 1
    %1626 = vsyncpa [#allocation4], 1

</llo_original>
